<compile_context>
chip_gen: v7x
topology: tpu7x:2x2x1
jax: 0.10.0
libtpu: 0.0.40
codegen_flags: <defaults>
</compile_context>

<pallas_src>
import math
from functools import partial

import jax
import jax.numpy as jnp
from jax import lax
from jax.experimental import pallas as pl
from jax.experimental.pallas import tpu as pltpu


# --------------------------- math helpers (f32) ---------------------------

def _layernorm(x, eps=1e-6):
    # LayerNorm over last dim, no affine (elementwise_affine=False), eps=1e-6
    mu = jnp.mean(x, axis=-1, keepdims=True)
    var = jnp.mean((x - mu) ** 2, axis=-1, keepdims=True)
    return (x - mu) * lax.rsqrt(var + eps)


def _gelu_tanh(x):
    # GELU with tanh approximation (matches nn.GELU(approximate='tanh'))
    c0 = math.sqrt(2.0 / math.pi)
    return 0.5 * x * (1.0 + jnp.tanh(c0 * (x + 0.044715 * x * x * x)))


# ------------------------------- kernels ----------------------------------

def qkv_kernel(x_ref, mod_ref, w_ref, b_ref, q_ref, k_ref, v_ref, *,
               num_heads, head_dim):
    """LN(x)*(1+scale_msa)+shift_msa, @ W_qkv (+b), head-split to (H, TN, D)."""
    x = x_ref[0].astype(jnp.float32)                 # (TN, C)
    C = x.shape[-1]
    shift = mod_ref[0, :, :C]                        # (1, C) f32
    scale = mod_ref[0, :, C:]                        # (1, C) f32
    xm = _layernorm(x) * (1.0 + scale) + shift
    qkv = jnp.dot(xm.astype(w_ref.dtype), w_ref[...],
                  preferred_element_type=jnp.float32) + b_ref[...]   # (TN, 3C)
    qkv = qkv.astype(q_ref.dtype)
    H, D = num_heads, head_dim
    # Static head split (XLU/VMEM copies; free under the MXU-bound GEMM).
    for h in range(H):
        q_ref[0, h] = qkv[:, h * D:(h + 1) * D]
        k_ref[0, h] = qkv[:, C + h * D:C + (h + 1) * D]
        v_ref[0, h] = qkv[:, 2 * C + h * D:2 * C + (h + 1) * D]


def flash_attn_kernel(q_ref, k_ref, v_ref, o_ref, m_sc, l_sc, acc_sc, *,
                      recip_approx):
    """Per-head online-softmax attention.  Grid = (B, H, q-tiles, kv-tiles);
    the kv axis is the reduction ('arbitrary') axis.  q is pre-scaled by
    1/sqrt(D) (folded into w_qkv in the wrapper)."""
    ki = pl.program_id(3)

    @pl.when(ki == 0)
    def _init():
        m_sc[...] = jnp.full(m_sc.shape, -jnp.inf, dtype=m_sc.dtype)
        l_sc[...] = jnp.zeros(l_sc.shape, dtype=l_sc.dtype)
        acc_sc[...] = jnp.zeros(acc_sc.shape, dtype=acc_sc.dtype)

    q = q_ref[0, 0]                                  # (TNq, D) bf16
    k = k_ref[0, 0]                                  # (TNk, D) bf16
    v = v_ref[0, 0]                                  # (TNk, D) bf16

    s = jnp.dot(q, k.T, preferred_element_type=jnp.float32)   # (TNq, TNk) f32
    m_prev = m_sc[...]
    m_new = jnp.maximum(m_prev, jnp.max(s, axis=-1, keepdims=True))
    alpha = jnp.exp(m_prev - m_new)
    # TODO(synk): on v6e/v7x the exp below could run in bf16 on the EUP for ~2x
    # throughput; kept in f32 for cross-generation (v5e) accuracy.
    p = jnp.exp(s - m_new)
    l_sc[...] = alpha * l_sc[...] + jnp.sum(p, axis=-1, keepdims=True)
    acc_sc[...] = alpha * acc_sc[...] + jnp.dot(
        p.astype(v.dtype), v, preferred_element_type=jnp.float32)
    m_sc[...] = m_new

    @pl.when(ki == pl.num_programs(3) - 1)
    def _finalize():
        inv_l = pl.reciprocal(l_sc[...], approx=recip_approx)
        o_ref[0, 0] = (acc_sc[...] * inv_l).astype(o_ref.dtype)


def proj_mlp_kernel(o_ref, x_ref, mod_ref,
                    wp_ref, bp_ref, w1_ref, b1_ref, w2_ref, b2_ref,
                    out_ref, x1_sc, xm2_sc, h2_sc, *, num_heads):
    """attn-proj + gated residual + LN + modulate on the first Hm step; one
    (C,THm)/(THm,C) MLP slab per step along the 'arbitrary' Hm axis; final
    gated residual on the last step."""
    m = pl.program_id(2)
    C = x_ref.shape[-1]

    @pl.when(m == 0)
    def _prologue():
        x = x_ref[0].astype(jnp.float32)             # (TN, C)
        o = o_ref[0]                                 # (H, TN, D) bf16
        gate_msa = mod_ref[0, :, 0 * C:1 * C]
        shift_mlp = mod_ref[0, :, 1 * C:2 * C]
        scale_mlp = mod_ref[0, :, 2 * C:3 * C]
        # Head-merged output projection: sum_h o_h @ W_proj[h*D:(h+1)*D, :]
        y = jnp.zeros((x.shape[0], C), dtype=jnp.float32)
        for h in range(num_heads):
            y = y + jnp.dot(o[h], wp_ref[h], preferred_element_type=jnp.float32)
        y = y + bp_ref[...]
        x1 = x + gate_msa * y
        x1_sc[...] = x1
        xm2 = _layernorm(x1) * (1.0 + scale_mlp) + shift_mlp
        xm2_sc[...] = xm2.astype(xm2_sc.dtype)
        h2_sc[...] = jnp.zeros(h2_sc.shape, dtype=h2_sc.dtype)

    # One Hm slab: fc1 -> GELU -> fc2 partial product, accumulated in f32.
    h1 = jnp.dot(xm2_sc[...], w1_ref[...],
                 preferred_element_type=jnp.float32) + b1_ref[...]
    h1 = _gelu_tanh(h1)
    h2_sc[...] += jnp.dot(h1.astype(w2_ref.dtype), w2_ref[...],
                          preferred_element_type=jnp.float32)

    @pl.when(m == pl.num_programs(2) - 1)
    def _epilogue():
        gate_mlp = mod_ref[0, :, 3 * C:4 * C]
        h2 = h2_sc[...] + b2_ref[...]
        out_ref[0] = (x1_sc[...] + gate_mlp * h2).astype(out_ref.dtype)


# ------------------------------- wrapper -----------------------------------

def _pick_tile(n, prefs):
    for t in prefs:
        if t <= n and n % t == 0:
            return t
    return n


def _default_vmem_limit_bytes():
    """~7/8 of physical VMEM (128 MiB on v5e/v6e, 64 MiB on v7x); safe fallback."""
    try:
        cap = getattr(pltpu.get_tpu_info(), "vmem_capacity_bytes", None)
        if cap:
            return int(min(cap * 7 // 8, 112 * 1024 * 1024))
    except Exception:
        pass
    return 64 * 1024 * 1024


def _const_spec(shape, single_buffer=True):
    """Full-array block with a constant index map (resident across the grid).
    Single-buffered when supported: the block never changes, so a second
    pipeline buffer would only double its VMEM footprint."""
    index_map = lambda *_: (0,) * len(shape)
    if single_buffer:
        try:
            return pl.BlockSpec(shape, index_map, pipeline_mode=pl.Buffered(1))
        except Exception:
            pass
    return pl.BlockSpec(shape, index_map)


def dit_block(x, c, params, num_heads, *,
              seq_tile=None, attn_tile=None, mlp_tile=None,
              matmul_dtype=jnp.bfloat16, vmem_limit_bytes=None,
              single_buffer_weights=True, recip_approx=True):
    B, N, C = x.shape
    H = num_heads
    assert C % H == 0, "hidden must be divisible by num_heads"
    D = C // H
    Hm = params["w_fc1"].shape[1]

    TN = seq_tile if seq_tile is not None else _pick_tile(N, (512, 256, 128, 64, 32, 16, 8))
    TA = attn_tile if attn_tile is not None else _pick_tile(N, (256, 128, 64, 32, 16, 8))
    THm = mlp_tile if mlp_tile is not None else _pick_tile(Hm, (2048, 1024, 512, 256, 128))
    assert N % TN == 0 and N % TA == 0 and Hm % THm == 0
    NT, NA, MT = N // TN, N // TA, Hm // THm

    f32 = jnp.float32
    wd = matmul_dtype
    if vmem_limit_bytes is None:
        vmem_limit_bytes = _default_vmem_limit_bytes()

    # ---- adaLN-Zero modulation in plain JAX: tiny (B,C)@(C,6C) matmul; keeps the
    # largest weight out of VMEM and the M=1 matmul off the kernels' MXU path. ----
    c32 = c.astype(f32)
    ada = (c32 * jax.nn.sigmoid(c32)) @ params["w_ada"].astype(f32) \
        + params["b_ada"].astype(f32)                         # (B, 6C)
    mod_msa = ada[:, :2 * C].reshape(B, 1, 2 * C)  # [shift_msa | scale_msa]
    mod_mlp = ada[:, 2 * C:].reshape(B, 1, 4 * C)  # [gate_msa | shift_mlp | scale_mlp | gate_mlp]

    # ---- weights: fold 1/sqrt(D) into q columns (f32, exact); bf16 for the MXU ----
    inv_sqrt_d = 1.0 / math.sqrt(D)
    w_qkv = params["w_qkv"].astype(f32).at[:, :C].multiply(inv_sqrt_d).astype(wd)
    b_qkv = params["b_qkv"].astype(f32).at[:, :C].multiply(inv_sqrt_d)
    w_proj = params["w_proj"].astype(wd).reshape(H, D, C)      # rows grouped per head
    b_proj = params["b_proj"].astype(f32)
    w_fc1 = params["w_fc1"].astype(wd)
    b_fc1 = params["b_fc1"].astype(f32)
    w_fc2 = params["w_fc2"].astype(wd)
    b_fc2 = params["b_fc2"].astype(f32)

    wd_b = w_qkv.dtype.itemsize
    x_b = x.dtype.itemsize
    nbytes = lambda a: int(a.size) * a.dtype.itemsize
    sb = single_buffer_weights

    # ---- 1) LN + modulate + QKV projection; head split to (B, H, N, D) ----
    ce1 = pl.CostEstimate(
        flops=2 * B * N * C * 3 * C,
        transcendentals=0,
        bytes_accessed=int(B * N * C * x_b + nbytes(w_qkv) + nbytes(b_qkv)
                           + nbytes(mod_msa) + 3 * B * N * C * wd_b))
    qkv_shape = jax.ShapeDtypeStruct((B, H, N, D), wd)
    q, k, v = pl.pallas_call(
        partial(qkv_kernel, num_heads=H, head_dim=D),
        out_shape=(qkv_shape, qkv_shape, qkv_shape),
        grid=(B, NT),
        in_specs=[
            pl.BlockSpec((1, TN, C), lambda b, t: (b, t, 0)),
            pl.BlockSpec((1, 1, 2 * C), lambda b, t: (b, 0, 0)),
            _const_spec((C, 3 * C), sb),
            _const_spec((1, 3 * C), sb),
        ],
        out_specs=(pl.BlockSpec((1, H, TN, D), lambda b, t: (b, 0, t, 0)),) * 3,
        compiler_params=pltpu.CompilerParams(
            dimension_semantics=("parallel", "parallel"),
            vmem_limit_bytes=vmem_limit_bytes),
        cost_estimate=ce1,
    )(x, mod_msa, w_qkv, b_qkv)

    # ---- 2) per-head flash attention over KV tiles ----
    ce2 = pl.CostEstimate(
        flops=4 * B * H * N * N * D,
        transcendentals=B * H * N * N,
        bytes_accessed=int(4 * B * N * C * wd_b))
    o = pl.pallas_call(
        partial(flash_attn_kernel, recip_approx=recip_approx),
        out_shape=jax.ShapeDtypeStruct((B, H, N, D), wd),
        grid=(B, H, NA, NA),
        in_specs=[
            pl.BlockSpec((1, 1, TA, D), lambda b, h, qi, ki: (b, h, qi, 0)),
            pl.BlockSpec((1, 1, TA, D), lambda b, h, qi, ki: (b, h, ki, 0)),
            pl.BlockSpec((1, 1, TA, D), lambda b, h, qi, ki: (b, h, ki, 0)),
        ],
        out_specs=pl.BlockSpec((1, 1, TA, D), lambda b, h, qi, ki: (b, h, qi, 0)),
        scratch_shapes=[
            pltpu.VMEM((TA, 1), jnp.float32),   # running max
            pltpu.VMEM((TA, 1), jnp.float32),   # running denom
            pltpu.VMEM((TA, D), jnp.float32),   # output accumulator
        ],
        compiler_params=pltpu.CompilerParams(
            dimension_semantics=("parallel", "parallel", "parallel", "arbitrary"),
            vmem_limit_bytes=vmem_limit_bytes),
        cost_estimate=ce2,
    )(q, k, v)

    # ---- 3) proj + residual + LN + modulate + MLP (Hm-tiled) + residual ----
    ce3 = pl.CostEstimate(
        flops=2 * B * N * (C * C + 2 * C * Hm),
        transcendentals=B * N * Hm,
        bytes_accessed=int(B * N * C * (wd_b + 2 * x_b)
                           + nbytes(w_proj) + nbytes(w_fc1) + nbytes(w_fc2)
                           + nbytes(mod_mlp)))
    out = pl.pallas_call(
        partial(proj_mlp_kernel, num_heads=H),
        out_shape=jax.ShapeDtypeStruct((B, N, C), x.dtype),
        grid=(B, NT, MT),
        in_specs=[
            pl.BlockSpec((1, H, TN, D), lambda b, t, m: (b, 0, t, 0)),   # attn out
            pl.BlockSpec((1, TN, C), lambda b, t, m: (b, t, 0)),         # x (native dtype)
            pl.BlockSpec((1, 1, 4 * C), lambda b, t, m: (b, 0, 0)),      # modulation
            _const_spec((H, D, C), sb),                                  # w_proj (H,D,C)
            _const_spec((1, C), sb),                                     # b_proj
            pl.BlockSpec((C, THm), lambda b, t, m: (0, m)),              # w_fc1 slab
            pl.BlockSpec((1, THm), lambda b, t, m: (0, m)),              # b_fc1 slab
            pl.BlockSpec((THm, C), lambda b, t, m: (m, 0)),              # w_fc2 slab
            _const_spec((1, C), sb),                                     # b_fc2
        ],
        out_specs=pl.BlockSpec((1, TN, C), lambda b, t, m: (b, t, 0)),
        scratch_shapes=[
            pltpu.VMEM((TN, C), jnp.float32),   # x1 (residual after attention)
            pltpu.VMEM((TN, C), wd),            # modulated LN(x1) feeding fc1
            pltpu.VMEM((TN, C), jnp.float32),   # h2 accumulator
        ],
        compiler_params=pltpu.CompilerParams(
            dimension_semantics=("parallel", "parallel", "arbitrary"),
            vmem_limit_bytes=vmem_limit_bytes),
        cost_estimate=ce3,
    )(o, x, mod_mlp, w_proj, b_proj, w_fc1, b_fc1, w_fc2, b_fc2)
    return out


# ---- pure-JAX f32 reference (mirrors the PyTorch forward) ----

def dit_block_ref(x, c, params, num_heads):
    B, N, C = x.shape
    H = num_heads
    D = C // H
    silu_c = c * jax.nn.sigmoid(c)
    ada = silu_c @ params["w_ada"] + params["b_ada"]          # (B, 6C)
    sm, scm, gm, sl, scl, gl = jnp.split(ada, 6, axis=1)

    def modulate(z, shift, scl_):
        return z * (1.0 + scl_[:, None, :]) + shift[:, None, :]

    xm = modulate(_layernorm(x), sm, scm)
    qkv = xm @ params["w_qkv"] + params["b_qkv"]              # (B, N, 3C)
    qkv = qkv.reshape(B, N, 3, H, D).transpose(2, 0, 3, 1, 4)
    q, k, v = qkv[0], qkv[1], qkv[2]                          # (B, H, N, D)
    s = jnp.einsum("bhnd,bhmd->bhnm", q, k) / math.sqrt(D)
    p = jax.nn.softmax(s, axis=-1)
    o = jnp.einsum("bhnm,bhmd->bhnd", p, v)
    o = o.transpose(0, 2, 1, 3).reshape(B, N, C)
    o = o @ params["w_proj"] + params["b_proj"]
    x1 = x + gm[:, None, :] * o

    xm2 = modulate(_layernorm(x1), sl, scl)
    h1 = _gelu_tanh(xm2 @ params["w_fc1"] + params["b_fc1"])
    h2 = h1 @ params["w_fc2"] + params["b_fc2"]
    return x1 + gl[:, None, :] * h2


def init_params(key, hidden_size, mlp_ratio=4.0):
    C = hidden_size
    Hm = int(C * mlp_ratio)
    ks = jax.random.split(key, 10)
    nrm = lambda k, shape: (0.02 * jax.random.normal(k, shape)).astype(jnp.float32)
    return {
        "w_ada": nrm(ks[0], (C, 6 * C)),  "b_ada": nrm(ks[1], (1, 6 * C)),
        "w_qkv": nrm(ks[2], (C, 3 * C)),  "b_qkv": nrm(ks[3], (1, 3 * C)),
        "w_proj": nrm(ks[4], (C, C)),     "b_proj": nrm(ks[5], (1, C)),
        "w_fc1": nrm(ks[6], (C, Hm)),     "b_fc1": nrm(ks[7], (1, Hm)),
        "w_fc2": nrm(ks[8], (Hm, C)),     "b_fc2": nrm(ks[9], (1, C)),
    }


if __name__ == "__main__":
    # TODO(synk): attn_mask path (forward here uses attn_mask=None) and dropout
    # (all drop probabilities are 0 / eval mode) are no-ops and are not implemented.
    B, N, C, H = 2, 64, 128, 4
    key = jax.random.PRNGKey(0)
    kx, kc, kp = jax.random.split(key, 3)
    x = jax.random.normal(kx, (B, N, C), dtype=jnp.float32)
    c = jax.random.normal(kc, (B, C), dtype=jnp.float32)
    params = init_params(kp, C, mlp_ratio=4.0)

    # seq_tile=32 / attn_tile=16 / mlp_tile=256 -> exercises the seq-tiled GEMMs,
    # the per-head online-softmax across 4 KV tiles, and the Hm accumulation axis.
    run = partial(dit_block, x, c, params, num_heads=H,
                  seq_tile=32, attn_tile=16, mlp_tile=256)
    try:
        out = jax.block_until_ready(run())
    except Exception:
        # Fallback for JAX builds that reject single-buffered (Buffered(1)) specs.
        out = jax.block_until_ready(run(single_buffer_weights=False))

    ref = dit_block_ref(x, c, params, num_heads=H)
    assert out.shape == (B, N, C)
    max_err = float(jnp.max(jnp.abs(out - ref)))
    # bf16 MXU operands / bf16 qkv+attn staging vs pure-f32 reference.
    assert jnp.allclose(out, ref, rtol=1e-2, atol=1e-2), \
        f"mismatch vs reference (max abs err {max_err})"
    print("KERNEL_OK")
</pallas_src>

<mosaic_0001>
module attributes {stable_mosaic.version = 11 : i64} {
  func.func @qkv_kernel(%arg0: i32, %arg1: i32, %arg2: memref<1x32x128xf32, #tpu.memory_space<vmem>>, %arg3: memref<1x1x256xf32, #tpu.memory_space<vmem>>, %arg4: memref<128x384xbf16, #tpu.memory_space<vmem>>, %arg5: memref<1x384xf32, #tpu.memory_space<vmem>>, %arg6: memref<1x4x32x32xbf16, #tpu.memory_space<vmem>>, %arg7: memref<1x4x32x32xbf16, #tpu.memory_space<vmem>>, %arg8: memref<1x4x32x32xbf16, #tpu.memory_space<vmem>>) attributes {dimension_semantics = [#tpu.dimension_semantics<parallel>, #tpu.dimension_semantics<parallel>], iteration_bounds = array<i64: 2, 2>, scalar_prefetch = 0 : i64, scratch_operands = 0 : i64, tpu.core_type = #tpu.core_type<tc>, window_params = [{transform_indices = @transform_0, window_bounds = array<i64: 1, 32, 128>}, {transform_indices = @transform_1, window_bounds = array<i64: 1, 1, 256>}, {pipeline_mode = #tpu.pipeline_mode<synchronous>, transform_indices = @transform_2, window_bounds = array<i64: 128, 384>}, {pipeline_mode = #tpu.pipeline_mode<synchronous>, transform_indices = @transform_3, window_bounds = array<i64: 1, 384>}, {transform_indices = @transform_4, window_bounds = array<i64: 1, 4, 32, 32>}, {transform_indices = @transform_5, window_bounds = array<i64: 1, 4, 32, 32>}, {transform_indices = @transform_6, window_bounds = array<i64: 1, 4, 32, 32>}]} {
    %c0 = arith.constant 0 : index
    %c0_0 = arith.constant 0 : index
    %c0_1 = arith.constant 0 : index
    %0 = vector.load %arg2[%c0, %c0_0, %c0_1] : memref<1x32x128xf32, #tpu.memory_space<vmem>>, vector<1x32x128xf32>
    %1 = vector.shape_cast %0 : vector<1x32x128xf32> to vector<32x128xf32>
    %c0_2 = arith.constant 0 : index
    %c0_3 = arith.constant 0 : index
    %c0_4 = arith.constant 0 : index
    %2 = vector.load %arg3[%c0_2, %c0_3, %c0_4] : memref<1x1x256xf32, #tpu.memory_space<vmem>>, vector<1x1x128xf32>
    %3 = vector.shape_cast %2 : vector<1x1x128xf32> to vector<1x128xf32>
    %c0_5 = arith.constant 0 : index
    %c0_6 = arith.constant 0 : index
    %c128 = arith.constant 128 : index
    %4 = vector.load %arg3[%c0_5, %c0_6, %c128] : memref<1x1x256xf32, #tpu.memory_space<vmem>>, vector<1x1x128xf32>
    %5 = vector.shape_cast %4 : vector<1x1x128xf32> to vector<1x128xf32>
    %cst = arith.constant dense<0.000000e+00> : vector<32xf32>
    %6 = vector.multi_reduction <add>, %1, %cst [1] : vector<32x128xf32> to vector<32xf32>
    %7 = vector.shape_cast %6 : vector<32xf32> to vector<32x1xf32>
    %cst_7 = arith.constant 1.280000e+02 : f32
    %8 = vector.broadcast %cst_7 : f32 to vector<32x1xf32>
    %9 = arith.divf %7, %8 : vector<32x1xf32>
    %10 = vector.broadcast %9 : vector<32x1xf32> to vector<32x128xf32>
    %11 = arith.subf %1, %10 : vector<32x128xf32>
    %12 = arith.mulf %11, %11 : vector<32x128xf32>
    %cst_8 = arith.constant dense<0.000000e+00> : vector<32xf32>
    %13 = vector.multi_reduction <add>, %12, %cst_8 [1] : vector<32x128xf32> to vector<32xf32>
    %14 = vector.shape_cast %13 : vector<32xf32> to vector<32x1xf32>
    %cst_9 = arith.constant 1.280000e+02 : f32
    %15 = vector.broadcast %cst_9 : f32 to vector<32x1xf32>
    %16 = arith.divf %14, %15 : vector<32x1xf32>
    %17 = vector.broadcast %9 : vector<32x1xf32> to vector<32x128xf32>
    %18 = arith.subf %1, %17 : vector<32x128xf32>
    %cst_10 = arith.constant 9.99999997E-7 : f32
    %19 = vector.broadcast %cst_10 : f32 to vector<32x1xf32>
    %20 = arith.addf %16, %19 : vector<32x1xf32>
    %21 = math.rsqrt %20 : vector<32x1xf32>
    %22 = vector.broadcast %21 : vector<32x1xf32> to vector<32x128xf32>
    %23 = arith.mulf %18, %22 : vector<32x128xf32>
    %cst_11 = arith.constant 1.000000e+00 : f32
    %24 = vector.broadcast %cst_11 : f32 to vector<1x128xf32>
    %25 = arith.addf %24, %5 : vector<1x128xf32>
    %26 = vector.broadcast %25 : vector<1x128xf32> to vector<32x128xf32>
    %27 = arith.mulf %23, %26 : vector<32x128xf32>
    %28 = vector.broadcast %3 : vector<1x128xf32> to vector<32x128xf32>
    %29 = arith.addf %27, %28 : vector<32x128xf32>
    %30 = arith.truncf %29 : vector<32x128xf32> to vector<32x128xbf16>
    %c0_12 = arith.constant 0 : index
    %c0_13 = arith.constant 0 : index
    %31 = vector.load %arg4[%c0_12, %c0_13] : memref<128x384xbf16, #tpu.memory_space<vmem>>, vector<128x384xbf16>
    %cst_14 = arith.constant dense<0.000000e+00> : vector<32x384xf32>
    %32 = tpu.matmul %30, %31, %cst_14 {dimension_numbers = #tpu.dot_dimension_numbers<[1], [0], [0], [1], [0, 0, 1, 1], [], []>} : vector<32x128xbf16>, vector<128x384xbf16>, vector<32x384xf32> -> vector<32x384xf32>
    %c0_15 = arith.constant 0 : index
    %c0_16 = arith.constant 0 : index
    %33 = vector.load %arg5[%c0_15, %c0_16] : memref<1x384xf32, #tpu.memory_space<vmem>>, vector<1x384xf32>
    %34 = vector.broadcast %33 : vector<1x384xf32> to vector<32x384xf32>
    %35 = arith.addf %32, %34 : vector<32x384xf32>
    %36 = arith.truncf %35 : vector<32x384xf32> to vector<32x384xbf16>
    %37 = vector.extract_strided_slice %36 {offsets = [0, 0], sizes = [32, 32], strides = [1, 1]} : vector<32x384xbf16> to vector<32x32xbf16>
    %c0_17 = arith.constant 0 : index
    %c0_18 = arith.constant 0 : index
    %c0_19 = arith.constant 0 : index
    %c0_20 = arith.constant 0 : index
    %38 = vector.load %arg6[%c0_17, %c0_18, %c0_19, %c0_20] : memref<1x4x32x32xbf16, #tpu.memory_space<vmem>>, vector<1x1x32x32xbf16>
    %39 = vector.shape_cast %38 : vector<1x1x32x32xbf16> to vector<32x32xbf16>
    %40 = vector.shape_cast %37 : vector<32x32xbf16> to vector<1x1x32x32xbf16>
    tpu.vector_store %arg6[%c0_17, %c0_18, %c0_19, %c0_20], %40 {strides = array<i32>} : memref<1x4x32x32xbf16, #tpu.memory_space<vmem>>, vector<1x1x32x32xbf16>,
    %41 = vector.extract_strided_slice %36 {offsets = [0, 128], sizes = [32, 32], strides = [1, 1]} : vector<32x384xbf16> to vector<32x32xbf16>
    %c0_21 = arith.constant 0 : index
    %c0_22 = arith.constant 0 : index
    %c0_23 = arith.constant 0 : index
    %c0_24 = arith.constant 0 : index
    %42 = vector.load %arg7[%c0_21, %c0_22, %c0_23, %c0_24] : memref<1x4x32x32xbf16, #tpu.memory_space<vmem>>, vector<1x1x32x32xbf16>
    %43 = vector.shape_cast %42 : vector<1x1x32x32xbf16> to vector<32x32xbf16>
    %44 = vector.shape_cast %41 : vector<32x32xbf16> to vector<1x1x32x32xbf16>
    tpu.vector_store %arg7[%c0_21, %c0_22, %c0_23, %c0_24], %44 {strides = array<i32>} : memref<1x4x32x32xbf16, #tpu.memory_space<vmem>>, vector<1x1x32x32xbf16>,
    %45 = vector.extract_strided_slice %36 {offsets = [0, 256], sizes = [32, 32], strides = [1, 1]} : vector<32x384xbf16> to vector<32x32xbf16>
    %c0_25 = arith.constant 0 : index
    %c0_26 = arith.constant 0 : index
    %c0_27 = arith.constant 0 : index
    %c0_28 = arith.constant 0 : index
    %46 = vector.load %arg8[%c0_25, %c0_26, %c0_27, %c0_28] : memref<1x4x32x32xbf16, #tpu.memory_space<vmem>>, vector<1x1x32x32xbf16>
    %47 = vector.shape_cast %46 : vector<1x1x32x32xbf16> to vector<32x32xbf16>
    %48 = vector.shape_cast %45 : vector<32x32xbf16> to vector<1x1x32x32xbf16>
    tpu.vector_store %arg8[%c0_25, %c0_26, %c0_27, %c0_28], %48 {strides = array<i32>} : memref<1x4x32x32xbf16, #tpu.memory_space<vmem>>, vector<1x1x32x32xbf16>,
    %49 = vector.extract_strided_slice %36 {offsets = [0, 32], sizes = [32, 32], strides = [1, 1]} : vector<32x384xbf16> to vector<32x32xbf16>
    %c0_29 = arith.constant 0 : index
    %c1 = arith.constant 1 : index
    %c0_30 = arith.constant 0 : index
    %c0_31 = arith.constant 0 : index
    %50 = vector.load %arg6[%c0_29, %c1, %c0_30, %c0_31] : memref<1x4x32x32xbf16, #tpu.memory_space<vmem>>, vector<1x1x32x32xbf16>
    %51 = vector.shape_cast %50 : vector<1x1x32x32xbf16> to vector<32x32xbf16>
    %52 = vector.shape_cast %49 : vector<32x32xbf16> to vector<1x1x32x32xbf16>
    tpu.vector_store %arg6[%c0_29, %c1, %c0_30, %c0_31], %52 {strides = array<i32>} : memref<1x4x32x32xbf16, #tpu.memory_space<vmem>>, vector<1x1x32x32xbf16>,
    %53 = vector.extract_strided_slice %36 {offsets = [0, 160], sizes = [32, 32], strides = [1, 1]} : vector<32x384xbf16> to vector<32x32xbf16>
    %c0_32 = arith.constant 0 : index
    %c1_33 = arith.constant 1 : index
    %c0_34 = arith.constant 0 : index
    %c0_35 = arith.constant 0 : index
    %54 = vector.load %arg7[%c0_32, %c1_33, %c0_34, %c0_35] : memref<1x4x32x32xbf16, #tpu.memory_space<vmem>>, vector<1x1x32x32xbf16>
    %55 = vector.shape_cast %54 : vector<1x1x32x32xbf16> to vector<32x32xbf16>
    %56 = vector.shape_cast %53 : vector<32x32xbf16> to vector<1x1x32x32xbf16>
    tpu.vector_store %arg7[%c0_32, %c1_33, %c0_34, %c0_35], %56 {strides = array<i32>} : memref<1x4x32x32xbf16, #tpu.memory_space<vmem>>, vector<1x1x32x32xbf16>,
    %57 = vector.extract_strided_slice %36 {offsets = [0, 288], sizes = [32, 32], strides = [1, 1]} : vector<32x384xbf16> to vector<32x32xbf16>
    %c0_36 = arith.constant 0 : index
    %c1_37 = arith.constant 1 : index
    %c0_38 = arith.constant 0 : index
    %c0_39 = arith.constant 0 : index
    %58 = vector.load %arg8[%c0_36, %c1_37, %c0_38, %c0_39] : memref<1x4x32x32xbf16, #tpu.memory_space<vmem>>, vector<1x1x32x32xbf16>
    %59 = vector.shape_cast %58 : vector<1x1x32x32xbf16> to vector<32x32xbf16>
    %60 = vector.shape_cast %57 : vector<32x32xbf16> to vector<1x1x32x32xbf16>
    tpu.vector_store %arg8[%c0_36, %c1_37, %c0_38, %c0_39], %60 {strides = array<i32>} : memref<1x4x32x32xbf16, #tpu.memory_space<vmem>>, vector<1x1x32x32xbf16>,
    %61 = vector.extract_strided_slice %36 {offsets = [0, 64], sizes = [32, 32], strides = [1, 1]} : vector<32x384xbf16> to vector<32x32xbf16>
    %c0_40 = arith.constant 0 : index
    %c2 = arith.constant 2 : index
    %c0_41 = arith.constant 0 : index
    %c0_42 = arith.constant 0 : index
    %62 = vector.load %arg6[%c0_40, %c2, %c0_41, %c0_42] : memref<1x4x32x32xbf16, #tpu.memory_space<vmem>>, vector<1x1x32x32xbf16>
    %63 = vector.shape_cast %62 : vector<1x1x32x32xbf16> to vector<32x32xbf16>
    %64 = vector.shape_cast %61 : vector<32x32xbf16> to vector<1x1x32x32xbf16>
    tpu.vector_store %arg6[%c0_40, %c2, %c0_41, %c0_42], %64 {strides = array<i32>} : memref<1x4x32x32xbf16, #tpu.memory_space<vmem>>, vector<1x1x32x32xbf16>,
    %65 = vector.extract_strided_slice %36 {offsets = [0, 192], sizes = [32, 32], strides = [1, 1]} : vector<32x384xbf16> to vector<32x32xbf16>
    %c0_43 = arith.constant 0 : index
    %c2_44 = arith.constant 2 : index
    %c0_45 = arith.constant 0 : index
    %c0_46 = arith.constant 0 : index
    %66 = vector.load %arg7[%c0_43, %c2_44, %c0_45, %c0_46] : memref<1x4x32x32xbf16, #tpu.memory_space<vmem>>, vector<1x1x32x32xbf16>
    %67 = vector.shape_cast %66 : vector<1x1x32x32xbf16> to vector<32x32xbf16>
    %68 = vector.shape_cast %65 : vector<32x32xbf16> to vector<1x1x32x32xbf16>
    tpu.vector_store %arg7[%c0_43, %c2_44, %c0_45, %c0_46], %68 {strides = array<i32>} : memref<1x4x32x32xbf16, #tpu.memory_space<vmem>>, vector<1x1x32x32xbf16>,
    %69 = vector.extract_strided_slice %36 {offsets = [0, 320], sizes = [32, 32], strides = [1, 1]} : vector<32x384xbf16> to vector<32x32xbf16>
    %c0_47 = arith.constant 0 : index
    %c2_48 = arith.constant 2 : index
    %c0_49 = arith.constant 0 : index
    %c0_50 = arith.constant 0 : index
    %70 = vector.load %arg8[%c0_47, %c2_48, %c0_49, %c0_50] : memref<1x4x32x32xbf16, #tpu.memory_space<vmem>>, vector<1x1x32x32xbf16>
    %71 = vector.shape_cast %70 : vector<1x1x32x32xbf16> to vector<32x32xbf16>
    %72 = vector.shape_cast %69 : vector<32x32xbf16> to vector<1x1x32x32xbf16>
    tpu.vector_store %arg8[%c0_47, %c2_48, %c0_49, %c0_50], %72 {strides = array<i32>} : memref<1x4x32x32xbf16, #tpu.memory_space<vmem>>, vector<1x1x32x32xbf16>,
    %73 = vector.extract_strided_slice %36 {offsets = [0, 96], sizes = [32, 32], strides = [1, 1]} : vector<32x384xbf16> to vector<32x32xbf16>
    %c0_51 = arith.constant 0 : index
    %c3 = arith.constant 3 : index
    %c0_52 = arith.constant 0 : index
    %c0_53 = arith.constant 0 : index
    %74 = vector.load %arg6[%c0_51, %c3, %c0_52, %c0_53] : memref<1x4x32x32xbf16, #tpu.memory_space<vmem>>, vector<1x1x32x32xbf16>
    %75 = vector.shape_cast %74 : vector<1x1x32x32xbf16> to vector<32x32xbf16>
    %76 = vector.shape_cast %73 : vector<32x32xbf16> to vector<1x1x32x32xbf16>
    tpu.vector_store %arg6[%c0_51, %c3, %c0_52, %c0_53], %76 {strides = array<i32>} : memref<1x4x32x32xbf16, #tpu.memory_space<vmem>>, vector<1x1x32x32xbf16>,
    %77 = vector.extract_strided_slice %36 {offsets = [0, 224], sizes = [32, 32], strides = [1, 1]} : vector<32x384xbf16> to vector<32x32xbf16>
    %c0_54 = arith.constant 0 : index
    %c3_55 = arith.constant 3 : index
    %c0_56 = arith.constant 0 : index
    %c0_57 = arith.constant 0 : index
    %78 = vector.load %arg7[%c0_54, %c3_55, %c0_56, %c0_57] : memref<1x4x32x32xbf16, #tpu.memory_space<vmem>>, vector<1x1x32x32xbf16>
    %79 = vector.shape_cast %78 : vector<1x1x32x32xbf16> to vector<32x32xbf16>
    %80 = vector.shape_cast %77 : vector<32x32xbf16> to vector<1x1x32x32xbf16>
    tpu.vector_store %arg7[%c0_54, %c3_55, %c0_56, %c0_57], %80 {strides = array<i32>} : memref<1x4x32x32xbf16, #tpu.memory_space<vmem>>, vector<1x1x32x32xbf16>,
    %81 = vector.extract_strided_slice %36 {offsets = [0, 352], sizes = [32, 32], strides = [1, 1]} : vector<32x384xbf16> to vector<32x32xbf16>
    %c0_58 = arith.constant 0 : index
    %c3_59 = arith.constant 3 : index
    %c0_60 = arith.constant 0 : index
    %c0_61 = arith.constant 0 : index
    %82 = vector.load %arg8[%c0_58, %c3_59, %c0_60, %c0_61] : memref<1x4x32x32xbf16, #tpu.memory_space<vmem>>, vector<1x1x32x32xbf16>
    %83 = vector.shape_cast %82 : vector<1x1x32x32xbf16> to vector<32x32xbf16>
    %84 = vector.shape_cast %81 : vector<32x32xbf16> to vector<1x1x32x32xbf16>
    tpu.vector_store %arg8[%c0_58, %c3_59, %c0_60, %c0_61], %84 {strides = array<i32>} : memref<1x4x32x32xbf16, #tpu.memory_space<vmem>>, vector<1x1x32x32xbf16>,
    return
  }
  func.func @transform_0(%arg0: i32, %arg1: i32) -> (i32, i32, i32) {
    %c0_i32 = arith.constant 0 : i32
    %c0_i32_0 = arith.constant 0 : i32
    return %arg0, %arg1, %c0_i32 : i32, i32, i32
  }
  func.func @transform_1(%arg0: i32, %arg1: i32) -> (i32, i32, i32) {
    %c0_i32 = arith.constant 0 : i32
    %c0_i32_0 = arith.constant 0 : i32
    %c0_i32_1 = arith.constant 0 : i32
    return %arg0, %c0_i32, %c0_i32_0 : i32, i32, i32
  }
  func.func @transform_2(%arg0: i32, %arg1: i32) -> (i32, i32) {
    %c0_i32 = arith.constant 0 : i32
    %c0_i32_0 = arith.constant 0 : i32
    %c0_i32_1 = arith.constant 0 : i32
    return %c0_i32, %c0_i32_0 : i32, i32
  }
  func.func @transform_3(%arg0: i32, %arg1: i32) -> (i32, i32) {
    %c0_i32 = arith.constant 0 : i32
    %c0_i32_0 = arith.constant 0 : i32
    %c0_i32_1 = arith.constant 0 : i32
    return %c0_i32, %c0_i32_0 : i32, i32
  }
  func.func @transform_4(%arg0: i32, %arg1: i32) -> (i32, i32, i32, i32) {
    %c0_i32 = arith.constant 0 : i32
    %c0_i32_0 = arith.constant 0 : i32
    %c0_i32_1 = arith.constant 0 : i32
    return %arg0, %c0_i32, %arg1, %c0_i32_0 : i32, i32, i32, i32
  }
  func.func @transform_5(%arg0: i32, %arg1: i32) -> (i32, i32, i32, i32) {
    %c0_i32 = arith.constant 0 : i32
    %c0_i32_0 = arith.constant 0 : i32
    %c0_i32_1 = arith.constant 0 : i32
    return %arg0, %c0_i32, %arg1, %c0_i32_0 : i32, i32, i32, i32
  }
  func.func @transform_6(%arg0: i32, %arg1: i32) -> (i32, i32, i32, i32) {
    %c0_i32 = arith.constant 0 : i32
    %c0_i32_0 = arith.constant 0 : i32
    %c0_i32_1 = arith.constant 0 : i32
    return %arg0, %c0_i32, %arg1, %c0_i32_0 : i32, i32, i32, i32
  }
}

module attributes {stable_mosaic.version = 11 : i64} {
  func.func @qkv_kernel(%arg0: i32, %arg1: i32, %arg2: memref<1x32x128xf32, #tpu.memory_space<vmem>>, %arg3: memref<1x1x256xf32, #tpu.memory_space<vmem>>, %arg4: memref<128x384xbf16, #tpu.memory_space<vmem>>, %arg5: memref<1x384xf32, #tpu.memory_space<vmem>>, %arg6: memref<1x4x32x32xbf16, #tpu.memory_space<vmem>>, %arg7: memref<1x4x32x32xbf16, #tpu.memory_space<vmem>>, %arg8: memref<1x4x32x32xbf16, #tpu.memory_space<vmem>>) attributes {dimension_semantics = [#tpu.dimension_semantics<parallel>, #tpu.dimension_semantics<parallel>], iteration_bounds = array<i64: 2, 2>, scalar_prefetch = 0 : i64, scratch_operands = 0 : i64, tpu.core_type = #tpu.core_type<tc>, window_params = [{transform_indices = @transform_0, window_bounds = array<i64: 1, 32, 128>}, {transform_indices = @transform_1, window_bounds = array<i64: 1, 1, 256>}, {pipeline_mode = #tpu.pipeline_mode<synchronous>, transform_indices = @transform_2, window_bounds = array<i64: 128, 384>}, {pipeline_mode = #tpu.pipeline_mode<synchronous>, transform_indices = @transform_3, window_bounds = array<i64: 1, 384>}, {transform_indices = @transform_4, window_bounds = array<i64: 1, 4, 32, 32>}, {transform_indices = @transform_5, window_bounds = array<i64: 1, 4, 32, 32>}, {transform_indices = @transform_6, window_bounds = array<i64: 1, 4, 32, 32>}]} {
    %c0 = arith.constant 0 : index
    %c0_0 = arith.constant 0 : index
    %c0_1 = arith.constant 0 : index
    %0 = vector.load %arg2[%c0, %c0_0, %c0_1] : memref<1x32x128xf32, #tpu.memory_space<vmem>>, vector<1x32x128xf32>
    %1 = vector.shape_cast %0 : vector<1x32x128xf32> to vector<32x128xf32>
    %c0_2 = arith.constant 0 : index
    %c0_3 = arith.constant 0 : index
    %c0_4 = arith.constant 0 : index
    %2 = vector.load %arg3[%c0_2, %c0_3, %c0_4] : memref<1x1x256xf32, #tpu.memory_space<vmem>>, vector<1x1x128xf32>
    %3 = vector.shape_cast %2 : vector<1x1x128xf32> to vector<1x128xf32>
    %c0_5 = arith.constant 0 : index
    %c0_6 = arith.constant 0 : index
    %c128 = arith.constant 128 : index
    %4 = vector.load %arg3[%c0_5, %c0_6, %c128] : memref<1x1x256xf32, #tpu.memory_space<vmem>>, vector<1x1x128xf32>
    %5 = vector.shape_cast %4 : vector<1x1x128xf32> to vector<1x128xf32>
    %cst = arith.constant dense<0.000000e+00> : vector<32xf32>
    %6 = vector.multi_reduction <add>, %1, %cst [1] : vector<32x128xf32> to vector<32xf32>
    %7 = vector.shape_cast %6 : vector<32xf32> to vector<32x1xf32>
    %cst_7 = arith.constant 1.280000e+02 : f32
    %8 = vector.broadcast %cst_7 : f32 to vector<32x1xf32>
    %9 = arith.divf %7, %8 : vector<32x1xf32>
    %10 = vector.broadcast %9 : vector<32x1xf32> to vector<32x128xf32>
    %11 = arith.subf %1, %10 : vector<32x128xf32>
    %12 = arith.mulf %11, %11 : vector<32x128xf32>
    %cst_8 = arith.constant dense<0.000000e+00> : vector<32xf32>
    %13 = vector.multi_reduction <add>, %12, %cst_8 [1] : vector<32x128xf32> to vector<32xf32>
    %14 = vector.shape_cast %13 : vector<32xf32> to vector<32x1xf32>
    %cst_9 = arith.constant 1.280000e+02 : f32
    %15 = vector.broadcast %cst_9 : f32 to vector<32x1xf32>
    %16 = arith.divf %14, %15 : vector<32x1xf32>
    %17 = vector.broadcast %9 : vector<32x1xf32> to vector<32x128xf32>
    %18 = arith.subf %1, %17 : vector<32x128xf32>
    %cst_10 = arith.constant 9.99999997E-7 : f32
    %19 = vector.broadcast %cst_10 : f32 to vector<32x1xf32>
    %20 = arith.addf %16, %19 : vector<32x1xf32>
    %21 = math.rsqrt %20 : vector<32x1xf32>
    %22 = vector.broadcast %21 : vector<32x1xf32> to vector<32x128xf32>
    %23 = arith.mulf %18, %22 : vector<32x128xf32>
    %cst_11 = arith.constant 1.000000e+00 : f32
    %24 = vector.broadcast %cst_11 : f32 to vector<1x128xf32>
    %25 = arith.addf %24, %5 : vector<1x128xf32>
    %26 = vector.broadcast %25 : vector<1x128xf32> to vector<32x128xf32>
    %27 = arith.mulf %23, %26 : vector<32x128xf32>
    %28 = vector.broadcast %3 : vector<1x128xf32> to vector<32x128xf32>
    %29 = arith.addf %27, %28 : vector<32x128xf32>
    %30 = arith.truncf %29 : vector<32x128xf32> to vector<32x128xbf16>
    %c0_12 = arith.constant 0 : index
    %c0_13 = arith.constant 0 : index
    %31 = vector.load %arg4[%c0_12, %c0_13] : memref<128x384xbf16, #tpu.memory_space<vmem>>, vector<128x384xbf16>
    %cst_14 = arith.constant dense<0.000000e+00> : vector<32x384xf32>
    %32 = tpu.matmul %30, %31, %cst_14 {dimension_numbers = #tpu.dot_dimension_numbers<[1], [0], [0], [1], [0, 0, 1, 1], [], []>} : vector<32x128xbf16>, vector<128x384xbf16>, vector<32x384xf32> -> vector<32x384xf32>
    %c0_15 = arith.constant 0 : index
    %c0_16 = arith.constant 0 : index
    %33 = vector.load %arg5[%c0_15, %c0_16] : memref<1x384xf32, #tpu.memory_space<vmem>>, vector<1x384xf32>
    %34 = vector.broadcast %33 : vector<1x384xf32> to vector<32x384xf32>
    %35 = arith.addf %32, %34 : vector<32x384xf32>
    %36 = arith.truncf %35 : vector<32x384xf32> to vector<32x384xbf16>
    %37 = vector.extract_strided_slice %36 {offsets = [0, 0], sizes = [32, 32], strides = [1, 1]} : vector<32x384xbf16> to vector<32x32xbf16>
    %c0_17 = arith.constant 0 : index
    %c0_18 = arith.constant 0 : index
    %c0_19 = arith.constant 0 : index
    %c0_20 = arith.constant 0 : index
    %38 = vector.load %arg6[%c0_17, %c0_18, %c0_19, %c0_20] : memref<1x4x32x32xbf16, #tpu.memory_space<vmem>>, vector<1x1x32x32xbf16>
    %39 = vector.shape_cast %38 : vector<1x1x32x32xbf16> to vector<32x32xbf16>
    %40 = vector.shape_cast %37 : vector<32x32xbf16> to vector<1x1x32x32xbf16>
    tpu.vector_store %arg6[%c0_17, %c0_18, %c0_19, %c0_20], %40 {strides = array<i32>} : memref<1x4x32x32xbf16, #tpu.memory_space<vmem>>, vector<1x1x32x32xbf16>,
    %41 = vector.extract_strided_slice %36 {offsets = [0, 128], sizes = [32, 32], strides = [1, 1]} : vector<32x384xbf16> to vector<32x32xbf16>
    %c0_21 = arith.constant 0 : index
    %c0_22 = arith.constant 0 : index
    %c0_23 = arith.constant 0 : index
    %c0_24 = arith.constant 0 : index
    %42 = vector.load %arg7[%c0_21, %c0_22, %c0_23, %c0_24] : memref<1x4x32x32xbf16, #tpu.memory_space<vmem>>, vector<1x1x32x32xbf16>
    %43 = vector.shape_cast %42 : vector<1x1x32x32xbf16> to vector<32x32xbf16>
    %44 = vector.shape_cast %41 : vector<32x32xbf16> to vector<1x1x32x32xbf16>
    tpu.vector_store %arg7[%c0_21, %c0_22, %c0_23, %c0_24], %44 {strides = array<i32>} : memref<1x4x32x32xbf16, #tpu.memory_space<vmem>>, vector<1x1x32x32xbf16>,
    %45 = vector.extract_strided_slice %36 {offsets = [0, 256], sizes = [32, 32], strides = [1, 1]} : vector<32x384xbf16> to vector<32x32xbf16>
    %c0_25 = arith.constant 0 : index
    %c0_26 = arith.constant 0 : index
    %c0_27 = arith.constant 0 : index
    %c0_28 = arith.constant 0 : index
    %46 = vector.load %arg8[%c0_25, %c0_26, %c0_27, %c0_28] : memref<1x4x32x32xbf16, #tpu.memory_space<vmem>>, vector<1x1x32x32xbf16>
    %47 = vector.shape_cast %46 : vector<1x1x32x32xbf16> to vector<32x32xbf16>
    %48 = vector.shape_cast %45 : vector<32x32xbf16> to vector<1x1x32x32xbf16>
    tpu.vector_store %arg8[%c0_25, %c0_26, %c0_27, %c0_28], %48 {strides = array<i32>} : memref<1x4x32x32xbf16, #tpu.memory_space<vmem>>, vector<1x1x32x32xbf16>,
    %49 = vector.extract_strided_slice %36 {offsets = [0, 32], sizes = [32, 32], strides = [1, 1]} : vector<32x384xbf16> to vector<32x32xbf16>
    %c0_29 = arith.constant 0 : index
    %c1 = arith.constant 1 : index
    %c0_30 = arith.constant 0 : index
    %c0_31 = arith.constant 0 : index
    %50 = vector.load %arg6[%c0_29, %c1, %c0_30, %c0_31] : memref<1x4x32x32xbf16, #tpu.memory_space<vmem>>, vector<1x1x32x32xbf16>
    %51 = vector.shape_cast %50 : vector<1x1x32x32xbf16> to vector<32x32xbf16>
    %52 = vector.shape_cast %49 : vector<32x32xbf16> to vector<1x1x32x32xbf16>
    tpu.vector_store %arg6[%c0_29, %c1, %c0_30, %c0_31], %52 {strides = array<i32>} : memref<1x4x32x32xbf16, #tpu.memory_space<vmem>>, vector<1x1x32x32xbf16>,
    %53 = vector.extract_strided_slice %36 {offsets = [0, 160], sizes = [32, 32], strides = [1, 1]} : vector<32x384xbf16> to vector<32x32xbf16>
    %c0_32 = arith.constant 0 : index
    %c1_33 = arith.constant 1 : index
    %c0_34 = arith.constant 0 : index
    %c0_35 = arith.constant 0 : index
    %54 = vector.load %arg7[%c0_32, %c1_33, %c0_34, %c0_35] : memref<1x4x32x32xbf16, #tpu.memory_space<vmem>>, vector<1x1x32x32xbf16>
    %55 = vector.shape_cast %54 : vector<1x1x32x32xbf16> to vector<32x32xbf16>
    %56 = vector.shape_cast %53 : vector<32x32xbf16> to vector<1x1x32x32xbf16>
    tpu.vector_store %arg7[%c0_32, %c1_33, %c0_34, %c0_35], %56 {strides = array<i32>} : memref<1x4x32x32xbf16, #tpu.memory_space<vmem>>, vector<1x1x32x32xbf16>,
    %57 = vector.extract_strided_slice %36 {offsets = [0, 288], sizes = [32, 32], strides = [1, 1]} : vector<32x384xbf16> to vector<32x32xbf16>
    %c0_36 = arith.constant 0 : index
    %c1_37 = arith.constant 1 : index
    %c0_38 = arith.constant 0 : index
    %c0_39 = arith.constant 0 : index
    %58 = vector.load %arg8[%c0_36, %c1_37, %c0_38, %c0_39] : memref<1x4x32x32xbf16, #tpu.memory_space<vmem>>, vector<1x1x32x32xbf16>
    %59 = vector.shape_cast %58 : vector<1x1x32x32xbf16> to vector<32x32xbf16>
    %60 = vector.shape_cast %57 : vector<32x32xbf16> to vector<1x1x32x32xbf16>
    tpu.vector_store %arg8[%c0_36, %c1_37, %c0_38, %c0_39], %60 {strides = array<i32>} : memref<1x4x32x32xbf16, #tpu.memory_space<vmem>>, vector<1x1x32x32xbf16>,
    %61 = vector.extract_strided_slice %36 {offsets = [0, 64], sizes = [32, 32], strides = [1, 1]} : vector<32x384xbf16> to vector<32x32xbf16>
    %c0_40 = arith.constant 0 : index
    %c2 = arith.constant 2 : index
    %c0_41 = arith.constant 0 : index
    %c0_42 = arith.constant 0 : index
    %62 = vector.load %arg6[%c0_40, %c2, %c0_41, %c0_42] : memref<1x4x32x32xbf16, #tpu.memory_space<vmem>>, vector<1x1x32x32xbf16>
    %63 = vector.shape_cast %62 : vector<1x1x32x32xbf16> to vector<32x32xbf16>
    %64 = vector.shape_cast %61 : vector<32x32xbf16> to vector<1x1x32x32xbf16>
    tpu.vector_store %arg6[%c0_40, %c2, %c0_41, %c0_42], %64 {strides = array<i32>} : memref<1x4x32x32xbf16, #tpu.memory_space<vmem>>, vector<1x1x32x32xbf16>,
    %65 = vector.extract_strided_slice %36 {offsets = [0, 192], sizes = [32, 32], strides = [1, 1]} : vector<32x384xbf16> to vector<32x32xbf16>
    %c0_43 = arith.constant 0 : index
    %c2_44 = arith.constant 2 : index
    %c0_45 = arith.constant 0 : index
    %c0_46 = arith.constant 0 : index
    %66 = vector.load %arg7[%c0_43, %c2_44, %c0_45, %c0_46] : memref<1x4x32x32xbf16, #tpu.memory_space<vmem>>, vector<1x1x32x32xbf16>
    %67 = vector.shape_cast %66 : vector<1x1x32x32xbf16> to vector<32x32xbf16>
    %68 = vector.shape_cast %65 : vector<32x32xbf16> to vector<1x1x32x32xbf16>
    tpu.vector_store %arg7[%c0_43, %c2_44, %c0_45, %c0_46], %68 {strides = array<i32>} : memref<1x4x32x32xbf16, #tpu.memory_space<vmem>>, vector<1x1x32x32xbf16>,
    %69 = vector.extract_strided_slice %36 {offsets = [0, 320], sizes = [32, 32], strides = [1, 1]} : vector<32x384xbf16> to vector<32x32xbf16>
    %c0_47 = arith.constant 0 : index
    %c2_48 = arith.constant 2 : index
    %c0_49 = arith.constant 0 : index
    %c0_50 = arith.constant 0 : index
    %70 = vector.load %arg8[%c0_47, %c2_48, %c0_49, %c0_50] : memref<1x4x32x32xbf16, #tpu.memory_space<vmem>>, vector<1x1x32x32xbf16>
    %71 = vector.shape_cast %70 : vector<1x1x32x32xbf16> to vector<32x32xbf16>
    %72 = vector.shape_cast %69 : vector<32x32xbf16> to vector<1x1x32x32xbf16>
    tpu.vector_store %arg8[%c0_47, %c2_48, %c0_49, %c0_50], %72 {strides = array<i32>} : memref<1x4x32x32xbf16, #tpu.memory_space<vmem>>, vector<1x1x32x32xbf16>,
    %73 = vector.extract_strided_slice %36 {offsets = [0, 96], sizes = [32, 32], strides = [1, 1]} : vector<32x384xbf16> to vector<32x32xbf16>
    %c0_51 = arith.constant 0 : index
    %c3 = arith.constant 3 : index
    %c0_52 = arith.constant 0 : index
    %c0_53 = arith.constant 0 : index
    %74 = vector.load %arg6[%c0_51, %c3, %c0_52, %c0_53] : memref<1x4x32x32xbf16, #tpu.memory_space<vmem>>, vector<1x1x32x32xbf16>
    %75 = vector.shape_cast %74 : vector<1x1x32x32xbf16> to vector<32x32xbf16>
    %76 = vector.shape_cast %73 : vector<32x32xbf16> to vector<1x1x32x32xbf16>
    tpu.vector_store %arg6[%c0_51, %c3, %c0_52, %c0_53], %76 {strides = array<i32>} : memref<1x4x32x32xbf16, #tpu.memory_space<vmem>>, vector<1x1x32x32xbf16>,
    %77 = vector.extract_strided_slice %36 {offsets = [0, 224], sizes = [32, 32], strides = [1, 1]} : vector<32x384xbf16> to vector<32x32xbf16>
    %c0_54 = arith.constant 0 : index
    %c3_55 = arith.constant 3 : index
    %c0_56 = arith.constant 0 : index
    %c0_57 = arith.constant 0 : index
    %78 = vector.load %arg7[%c0_54, %c3_55, %c0_56, %c0_57] : memref<1x4x32x32xbf16, #tpu.memory_space<vmem>>, vector<1x1x32x32xbf16>
    %79 = vector.shape_cast %78 : vector<1x1x32x32xbf16> to vector<32x32xbf16>
    %80 = vector.shape_cast %77 : vector<32x32xbf16> to vector<1x1x32x32xbf16>
    tpu.vector_store %arg7[%c0_54, %c3_55, %c0_56, %c0_57], %80 {strides = array<i32>} : memref<1x4x32x32xbf16, #tpu.memory_space<vmem>>, vector<1x1x32x32xbf16>,
    %81 = vector.extract_strided_slice %36 {offsets = [0, 352], sizes = [32, 32], strides = [1, 1]} : vector<32x384xbf16> to vector<32x32xbf16>
    %c0_58 = arith.constant 0 : index
    %c3_59 = arith.constant 3 : index
    %c0_60 = arith.constant 0 : index
    %c0_61 = arith.constant 0 : index
    %82 = vector.load %arg8[%c0_58, %c3_59, %c0_60, %c0_61] : memref<1x4x32x32xbf16, #tpu.memory_space<vmem>>, vector<1x1x32x32xbf16>
    %83 = vector.shape_cast %82 : vector<1x1x32x32xbf16> to vector<32x32xbf16>
    %84 = vector.shape_cast %81 : vector<32x32xbf16> to vector<1x1x32x32xbf16>
    tpu.vector_store %arg8[%c0_58, %c3_59, %c0_60, %c0_61], %84 {strides = array<i32>} : memref<1x4x32x32xbf16, #tpu.memory_space<vmem>>, vector<1x1x32x32xbf16>,
    return
  }
  func.func @transform_0(%arg0: i32, %arg1: i32) -> (i32, i32, i32) {
    %c0_i32 = arith.constant 0 : i32
    %c0_i32_0 = arith.constant 0 : i32
    return %arg0, %arg1, %c0_i32 : i32, i32, i32
  }
  func.func @transform_1(%arg0: i32, %arg1: i32) -> (i32, i32, i32) {
    %c0_i32 = arith.constant 0 : i32
    %c0_i32_0 = arith.constant 0 : i32
    %c0_i32_1 = arith.constant 0 : i32
    return %arg0, %c0_i32, %c0_i32_0 : i32, i32, i32
  }
  func.func @transform_2(%arg0: i32, %arg1: i32) -> (i32, i32) {
    %c0_i32 = arith.constant 0 : i32
    %c0_i32_0 = arith.constant 0 : i32
    %c0_i32_1 = arith.constant 0 : i32
    return %c0_i32, %c0_i32_0 : i32, i32
  }
  func.func @transform_3(%arg0: i32, %arg1: i32) -> (i32, i32) {
    %c0_i32 = arith.constant 0 : i32
    %c0_i32_0 = arith.constant 0 : i32
    %c0_i32_1 = arith.constant 0 : i32
    return %c0_i32, %c0_i32_0 : i32, i32
  }
  func.func @transform_4(%arg0: i32, %arg1: i32) -> (i32, i32, i32, i32) {
    %c0_i32 = arith.constant 0 : i32
    %c0_i32_0 = arith.constant 0 : i32
    %c0_i32_1 = arith.constant 0 : i32
    return %arg0, %c0_i32, %arg1, %c0_i32_0 : i32, i32, i32, i32
  }
  func.func @transform_5(%arg0: i32, %arg1: i32) -> (i32, i32, i32, i32) {
    %c0_i32 = arith.constant 0 : i32
    %c0_i32_0 = arith.constant 0 : i32
    %c0_i32_1 = arith.constant 0 : i32
    return %arg0, %c0_i32, %arg1, %c0_i32_0 : i32, i32, i32, i32
  }
  func.func @transform_6(%arg0: i32, %arg1: i32) -> (i32, i32, i32, i32) {
    %c0_i32 = arith.constant 0 : i32
    %c0_i32_0 = arith.constant 0 : i32
    %c0_i32_1 = arith.constant 0 : i32
    return %arg0, %c0_i32, %arg1, %c0_i32_0 : i32, i32, i32, i32
  }
}

</mosaic_0001>

<llo_original>
// kernel: tpu_custom_call.1
$region0: #{tpu_custom_call.1}
  #allocation0 [shape = 'u32[]', space=smem, size = 0x4, offset = 0x4, fixed_abs, tag = 'smem constant byte address 0x4 - core index']
  #allocation1 [shape = 'u32[144,128]{1,0:T(1,128)}', space=vmem, size = 0x12000, scoped, tag = 'internal scratch']
  #allocation14 [shape = 's32[]', space=sflag, size = 0x4, offset = 0, fixed_abs, tag = 'sflag constant byte address 0x0 - dummy sync flag']
  #allocation16 [shape = 's32[]', space=sflag, size = 0x4, offset = 0, fixed_abs, tag = 'sflag constant byte address 0x0 - dummy sync flag']
  #allocation18 [shape = 's32[]', space=sflag, size = 0x4, offset = 0, fixed_abs, tag = 'sflag constant byte address 0x0 - dummy sync flag']
  %s0 = inlined_call_operand.hbm [shape: f32[2,64,128], index: 0, kind: input, shape index: {}]
  %s1 = inlined_call_operand.hbm [shape: f32[2,1,256], index: 1, kind: input, shape index: {}]
  %s2 = inlined_call_operand.hbm [shape: bf16[128,384], index: 2, kind: input, shape index: {}]
  %s3 = inlined_call_operand.hbm [shape: f32[1,384], index: 3, kind: input, shape index: {}]
  %s4 = inlined_call_operand.hbm [shape: bf16[2,4,64,32], index: 4, kind: output, shape index: {0}]
  %s5 = inlined_call_operand.hbm [shape: bf16[2,4,64,32], index: 5, kind: output, shape index: {1}]
  %s6 = inlined_call_operand.hbm [shape: bf16[2,4,64,32], index: 6, kind: output, shape index: {2}]
  %7 = xla_tuple %s4, %s5, %s6
  %s8 = sld [smem:[#allocation0]]
  $region81: #{tpu_custom_call.1} parent=0
    _
  %s10 = ssub.s32 1, %s8
  %s11 = scalar_select 0, %s10, %s8
  $region1: #{tpu_custom_call.1} parent=0
    #allocation2 [shape = 'u8[32768]{0}', space=vmem, size = 0x8000, scoped, tag = 'input window, operand 0']
    #allocation3 [shape = 's32[2]{0}', space=sflag, size = 0x8, scoped, tag = 'scoped memory for tpu_custom_call.1']
    #allocation4 [shape = 's32[2]{0}', space=sflag, size = 0x8, scoped, tag = 'scoped memory for tpu_custom_call.1']
    #allocation5 [shape = 'u8[2048]{0}', space=vmem, size = 0x800, scoped, tag = 'input window, operand 1']
    #allocation6 [shape = 's32[2]{0}', space=sflag, size = 0x8, scoped, tag = 'scoped memory for tpu_custom_call.1']
    #allocation7 [shape = 'u8[98304]{0}', space=vmem, size = 0x18000, scoped, tag = 'input window, operand 2, single buffered']
    #allocation8 [shape = 'u8[1536]{0}', space=vmem, size = 0x800, scoped, tag = 'input window, operand 3, single buffered']
    #allocation9 [shape = 's32[1]{0}', space=sflag, size = 0x4, scoped, tag = 'scoped memory for tpu_custom_call.1']
    #allocation10 [shape = 'u8[65536]{0}', space=vmem, size = 0x10000, scoped, tag = 'output window, operand 0']
    #allocation11 [shape = 'u8[65536]{0}', space=vmem, size = 0x10000, scoped, tag = 'output window, operand 1']
    #allocation12 [shape = 's32[2]{0}', space=sflag, size = 0x8, scoped, tag = 'scoped memory for tpu_custom_call.1']
    #allocation13 [shape = 'u8[65536]{0}', space=vmem, size = 0x10000, scoped, tag = 'output window, operand 2']
    %12 = vsyncpa [#allocation3], 0
    %s13 = scalar_lea.sflag [#allocation3], 1
    %14 = vsyncpa %s13, 0
    %15 = vsyncpa [#allocation6], 0
    %s16 = scalar_lea.sflag [#allocation6], 1
    %17 = vsyncpa %s16, 0
    %18 = vsyncpa [#allocation9], 0
    %19 = vsyncpa [#allocation4], 0
    %s20 = scalar_lea.sflag [#allocation4], 1
    %21 = vsyncpa %s20, 0
    %22 = vsyncpa [#allocation12], 0
    %s23 = scalar_lea.sflag [#allocation12], 1
    %24 = vsyncpa %s23, 0
    loop: start=0, step=1, limit=6
    $region2: #{tpu_custom_call.1} parent=1 // loop_pre_header
      _
    $region3: #{tpu_custom_call.1} parent=1 // loop_header
      %s26 = sphi 0, %s30
      %p27 = scmp.ge.s32.totalorder %s26, 6
      %s33 = sphi 0, %s45
      %s34 = sphi 0, %s41
      %s35 = sphi 0, %s33
      %s36 = sphi 0, %s34
      %s37 = sphi 0, %s35
      %s38 = sphi 0, %s36
      %s50 = sphi 0, %s52
      %s53 = sphi 0, %s50
      %s54 = sphi 0, %s53
      %s70 = sphi 0, %s54
      %s76 = sphi 0, %s78
      %s79 = sphi 0, %s76
      %s80 = sphi 0, %s79
      %s96 = sphi 0, %s80
      %s100 = sphi 0, %s100
      %s102 = sphi 0, %s100
      %s103 = sphi 0, %s102
      %s117 = sphi 0, %s103
      %s121 = sphi 0, %s121
      %s123 = sphi 0, %s121
      %s124 = sphi 0, %s123
      %s138 = sphi 0, %s124
      %s146 = sphi 0, %s148
      %s149 = sphi 0, %s146
      %s150 = sphi 0, %s149
      %s166 = sphi 0, %s150
      %s174 = sphi 0, %s176
      %s177 = sphi 0, %s174
      %s178 = sphi 0, %s177
      %s194 = sphi 0, %s178
      %s202 = sphi 0, %s204
      %s205 = sphi 0, %s202
      %s206 = sphi 0, %s205
      %s222 = sphi 0, %s206
    $region4: #{tpu_custom_call.1} parent=1 // loop_header_branch
      %29 = sbr.rel (%p27) target = $region8
    $region5: #{tpu_custom_call.1} parent=1 // loop_body
      %s31 = ssub.s32 %s26, 1
      %s32 = ssub.s32 %s26, 2
      %s39 = sadd.s32 1, %s34
      %p40 = scmp.ge.s32.totalorder %s39, 2
      %s41 = scalar_select %p40, 0, %s39
      %s42 = sadd.s32 1, %s33
      %s43 = scalar_select %p40, %s42, %s33
      %p44 = scmp.ge.s32.totalorder %s43, 2
      %s45 = scalar_select %p44, 0, %s43
      %s46 = ssub.s32 %s33, %s45
      %s47 = ssub.s32 %s34, %s41
      %s48 = sor.u32 %s46, %s47
      %p49 = scmp.eq.s32.totalorder %s48, 0
      %s51 = sadd.s32 %s50, 1
      %s52 = scalar_select %p49, %s50, %s51
      %p55 = pneg %p49
      %p56 = scmp.eq.s32.totalorder %s26, 3
      %p57 = por %p55, %p56
      %p58 = scmp.ne.s32.totalorder %s50, %s53
      %p59 = scmp.eq.s32.totalorder %s26, 0
      %p60 = por %p58, %p59
      %p61 = scmp.ne.s32.totalorder %s50, %s53
      %p62 = scmp.eq.s32.totalorder %s31, 3
      %p63 = por %p61, %p62
      %p64 = scmp.ne.s32.totalorder %s53, %s54
      %p65 = scmp.eq.s32.totalorder %s31, 0
      %p66 = por %p64, %p65
      %p67 = scmp.ne.s32.totalorder %s53, %s54
      %p68 = scmp.eq.s32.totalorder %s32, 3
      %p69 = por %p67, %p68
      %p71 = scmp.ne.s32.totalorder %s54, %s70
      %p72 = scmp.eq.s32.totalorder %s32, 0
      %p73 = por %p71, %p72
      %s74 = ssub.s32 %s33, %s45
      %p75 = scmp.eq.s32.totalorder %s74, 0
      %s77 = sadd.s32 %s76, 1
      %s78 = scalar_select %p75, %s76, %s77
      %p81 = pneg %p75
      %p82 = scmp.eq.s32.totalorder %s26, 3
      %p83 = por %p81, %p82
      %p84 = scmp.ne.s32.totalorder %s76, %s79
      %p85 = scmp.eq.s32.totalorder %s26, 0
      %p86 = por %p84, %p85
      %p87 = scmp.ne.s32.totalorder %s76, %s79
      %p88 = scmp.eq.s32.totalorder %s31, 3
      %p89 = por %p87, %p88
      %p90 = scmp.ne.s32.totalorder %s79, %s80
      %p91 = scmp.eq.s32.totalorder %s31, 0
      %p92 = por %p90, %p91
      %p93 = scmp.ne.s32.totalorder %s79, %s80
      %p94 = scmp.eq.s32.totalorder %s32, 3
      %p95 = por %p93, %p94
      %p97 = scmp.ne.s32.totalorder %s80, %s96
      %p98 = scmp.eq.s32.totalorder %s32, 0
      %p99 = por %p97, %p98
      %s101 = sadd.s32 %s100, 1
      %p104 = scmp.eq.s32.totalorder %s26, 3
      %p105 = scmp.ne.s32.totalorder %s100, %s102
      %p106 = scmp.eq.s32.totalorder %s26, 0
      %p107 = por %p105, %p106
      %p108 = scmp.ne.s32.totalorder %s100, %s102
      %p109 = scmp.eq.s32.totalorder %s31, 3
      %p110 = por %p108, %p109
      %p111 = scmp.ne.s32.totalorder %s102, %s103
      %p112 = scmp.eq.s32.totalorder %s31, 0
      %p113 = por %p111, %p112
      %p114 = scmp.ne.s32.totalorder %s102, %s103
      %p115 = scmp.eq.s32.totalorder %s32, 3
      %p116 = por %p114, %p115
      %p118 = scmp.ne.s32.totalorder %s103, %s117
      %p119 = scmp.eq.s32.totalorder %s32, 0
      %p120 = por %p118, %p119
      %s122 = sadd.s32 %s121, 1
      %p125 = scmp.eq.s32.totalorder %s26, 3
      %p126 = scmp.ne.s32.totalorder %s121, %s123
      %p127 = scmp.eq.s32.totalorder %s26, 0
      %p128 = por %p126, %p127
      %p129 = scmp.ne.s32.totalorder %s121, %s123
      %p130 = scmp.eq.s32.totalorder %s31, 3
      %p131 = por %p129, %p130
      %p132 = scmp.ne.s32.totalorder %s123, %s124
      %p133 = scmp.eq.s32.totalorder %s31, 0
      %p134 = por %p132, %p133
      %p135 = scmp.ne.s32.totalorder %s123, %s124
      %p136 = scmp.eq.s32.totalorder %s32, 3
      %p137 = por %p135, %p136
      %p139 = scmp.ne.s32.totalorder %s124, %s138
      %p140 = scmp.eq.s32.totalorder %s32, 0
      %p141 = por %p139, %p140
      %s142 = ssub.s32 %s33, %s45
      %s143 = ssub.s32 %s34, %s41
      %s144 = sor.u32 %s142, %s143
      %p145 = scmp.eq.s32.totalorder %s144, 0
      %s147 = sadd.s32 %s146, 1
      %s148 = scalar_select %p145, %s146, %s147
      %p151 = pneg %p145
      %p152 = scmp.eq.s32.totalorder %s26, 3
      %p153 = por %p151, %p152
      %p154 = scmp.ne.s32.totalorder %s146, %s149
      %p155 = scmp.eq.s32.totalorder %s26, 0
      %p156 = por %p154, %p155
      %p157 = scmp.ne.s32.totalorder %s146, %s149
      %p158 = scmp.eq.s32.totalorder %s31, 3
      %p159 = por %p157, %p158
      %p160 = scmp.ne.s32.totalorder %s149, %s150
      %p161 = scmp.eq.s32.totalorder %s31, 0
      %p162 = por %p160, %p161
      %p163 = scmp.ne.s32.totalorder %s149, %s150
      %p164 = scmp.eq.s32.totalorder %s32, 3
      %p165 = por %p163, %p164
      %p167 = scmp.ne.s32.totalorder %s150, %s166
      %p168 = scmp.eq.s32.totalorder %s32, 0
      %p169 = por %p167, %p168
      %s170 = ssub.s32 %s33, %s45
      %s171 = ssub.s32 %s34, %s41
      %s172 = sor.u32 %s170, %s171
      %p173 = scmp.eq.s32.totalorder %s172, 0
      %s175 = sadd.s32 %s174, 1
      %s176 = scalar_select %p173, %s174, %s175
      %p179 = pneg %p173
      %p180 = scmp.eq.s32.totalorder %s26, 3
      %p181 = por %p179, %p180
      %p182 = scmp.ne.s32.totalorder %s174, %s177
      %p183 = scmp.eq.s32.totalorder %s26, 0
      %p184 = por %p182, %p183
      %p185 = scmp.ne.s32.totalorder %s174, %s177
      %p186 = scmp.eq.s32.totalorder %s31, 3
      %p187 = por %p185, %p186
      %p188 = scmp.ne.s32.totalorder %s177, %s178
      %p189 = scmp.eq.s32.totalorder %s31, 0
      %p190 = por %p188, %p189
      %p191 = scmp.ne.s32.totalorder %s177, %s178
      %p192 = scmp.eq.s32.totalorder %s32, 3
      %p193 = por %p191, %p192
      %p195 = scmp.ne.s32.totalorder %s178, %s194
      %p196 = scmp.eq.s32.totalorder %s32, 0
      %p197 = por %p195, %p196
      %s198 = ssub.s32 %s33, %s45
      %s199 = ssub.s32 %s34, %s41
      %s200 = sor.u32 %s198, %s199
      %p201 = scmp.eq.s32.totalorder %s200, 0
      %s203 = sadd.s32 %s202, 1
      %s204 = scalar_select %p201, %s202, %s203
      %p207 = pneg %p201
      %p208 = scmp.eq.s32.totalorder %s26, 3
      %p209 = por %p207, %p208
      %p210 = scmp.ne.s32.totalorder %s202, %s205
      %p211 = scmp.eq.s32.totalorder %s26, 0
      %p212 = por %p210, %p211
      %p213 = scmp.ne.s32.totalorder %s202, %s205
      %p214 = scmp.eq.s32.totalorder %s31, 3
      %p215 = por %p213, %p214
      %p216 = scmp.ne.s32.totalorder %s205, %s206
      %p217 = scmp.eq.s32.totalorder %s31, 0
      %p218 = por %p216, %p217
      %p219 = scmp.ne.s32.totalorder %s205, %s206
      %p220 = scmp.eq.s32.totalorder %s32, 3
      %p221 = por %p219, %p220
      %p223 = scmp.ne.s32.totalorder %s206, %s222
      %p224 = scmp.eq.s32.totalorder %s32, 0
      %p225 = por %p223, %p224
      %p226 = scmp.le.s32.totalorder 1, %s26
      %p227 = scmp.lt.s32.totalorder %s26, 5
      %p228 = pnand %p226, %p227
      %p229 = pneg %p228
      // Predicated region
      $region9: #{tpu_custom_call.1} parent=5 // pred_check
        _
      $region10: #{tpu_custom_call.1} parent=5 // pred_check_branch
        %231 = sbr.rel (%p228) target = $region12
      $region11: #{tpu_custom_call.1} parent=5 // pred_region
        %s232 = ssub.s32 %s26, 1
        // Predicated region
        $region13: #{tpu_custom_call.1} parent=11 // pred_check
          %p233 = pneg %p113
        $region14: #{tpu_custom_call.1} parent=11 // pred_check_branch
          %235 = sbr.rel (%p233) target = $region16
        $region15: #{tpu_custom_call.1} parent=11 // pred_region
          %s237 = ssub.s32 3072, 3072
          %238 = vsyncadd [#allocation6], %s237
          %s239 = sshll.u32 [#allocation7], 4
          %s240 = int_to_ptr.vmem [resolvable:$true] %s239
          %245 = dma.hbm_to_vmem [thread:$0]  %s2, 3072, %s240, [#allocation6], 192, 192, 12
        $region16: #{tpu_custom_call.1} parent=11 // pred_fallthru
          _
        // Predicated region
        $region17: #{tpu_custom_call.1} parent=11 // pred_check
          %p246 = pneg %p134
        $region18: #{tpu_custom_call.1} parent=11 // pred_check_branch
          %248 = sbr.rel (%p246) target = $region20
        $region19: #{tpu_custom_call.1} parent=11 // pred_region
          %s250 = ssub.s32 48, 48
          %251 = vsyncadd [#allocation9], %s250
          %s253 = sshll.u32 [#allocation8], 4
          %s254 = int_to_ptr.vmem [resolvable:$true] %s253
          %256 = dma.hbm_to_vmem [thread:$0]  %s3, 48, %s254, [#allocation9]
        $region20: #{tpu_custom_call.1} parent=11 // pred_fallthru
          _
      $region12: #{tpu_custom_call.1} parent=5 // pred_fallthru
        _
      %p257 = scmp.lt.s32.totalorder %s26, 4
      // Predicated region
      $region21: #{tpu_custom_call.1} parent=5 // pred_check
        %p258 = pneg %p257
      $region22: #{tpu_custom_call.1} parent=5 // pred_check_branch
        %260 = sbr.rel (%p258) target = $region24
      $region23: #{tpu_custom_call.1} parent=5 // pred_region
        // Predicated region
        $region25: #{tpu_custom_call.1} parent=23 // pred_check
          %p261 = pneg %p60
        $region26: #{tpu_custom_call.1} parent=23 // pred_check_branch
          %263 = sbr.rel (%p261) target = $region28
        $region27: #{tpu_custom_call.1} parent=23 // pred_region
          %s264 = sand.u32 %s50, 1
          %s265 = scalar_lea.sflag [#allocation3], %s264
          %s266 = sand.u32 %s50, 1
          %s267 = smul.addr %s266, 32
          %s268 = scalar_lea.vmem [#allocation2], %s267
          %s269 = smul.u32 4, %s34
          %s271 = ssub.s32 512, 512
          %272 = vsyncadd %s265, %s271
          %s273 = smul.addr %s33, 8
          %s274 = sadd.s32 %s269, %s273
          %s275 = smul.addr %s274, 128
          %s276 = scalar_lea.hbm %s0, %s275
          %s277 = sshll.u32 %s268, 4
          %s278 = int_to_ptr.vmem [resolvable:$true] %s277
          %283 = dma.hbm_to_vmem [thread:$0]  %s276, 512, %s278, %s265, 128, 128, 8
        $region28: #{tpu_custom_call.1} parent=23 // pred_fallthru
          _
        // Predicated region
        $region29: #{tpu_custom_call.1} parent=23 // pred_check
          %p284 = pneg %p86
        $region30: #{tpu_custom_call.1} parent=23 // pred_check_branch
          %286 = sbr.rel (%p284) target = $region32
        $region31: #{tpu_custom_call.1} parent=23 // pred_region
          %s287 = sand.u32 %s26, 1
          %s288 = scalar_lea.sflag [#allocation6], %s287
          %s289 = sand.u32 %s76, 1
          %s290 = smul.addr %s289, 2
          %s291 = scalar_lea.vmem [#allocation5], %s290
          %s293 = ssub.s32 32, 32
          %294 = vsyncadd %s288, %s293
          %s295 = smul.addr %s33, 2
          %s296 = smul.addr %s295, 16
          %s297 = scalar_lea.hbm %s1, %s296
          %s299 = sshll.u32 %s291, 4
          %s300 = int_to_ptr.vmem [resolvable:$true] %s299
          %302 = dma.hbm_to_vmem [thread:$0]  %s297, 32, %s300, %s288
        $region32: #{tpu_custom_call.1} parent=23 // pred_fallthru
          _
      $region24: #{tpu_custom_call.1} parent=5 // pred_fallthru
        _
      %p303 = scmp.le.s32.totalorder 1, %s26
      %p304 = scmp.lt.s32.totalorder %s26, 5
      %p305 = pnand %p303, %p304
      %p306 = pneg %p305
      // Predicated region
      $region33: #{tpu_custom_call.1} parent=5 // pred_check
        _
      $region34: #{tpu_custom_call.1} parent=5 // pred_check_branch
        %308 = sbr.rel (%p305) target = $region36
      $region35: #{tpu_custom_call.1} parent=5 // pred_region
        %s309 = ssub.s32 %s26, 1
        %s310 = sand.u32 %s53, 1
        %s311 = scalar_lea.sflag [#allocation3], %s310
        %s312 = sand.u32 %s53, 1
        %s313 = smul.addr %s312, 32
        %s314 = scalar_lea.vmem [#allocation2], %s313
        // Predicated region
        $region37: #{tpu_custom_call.1} parent=35 // pred_check
          %p315 = pneg %p66
        $region38: #{tpu_custom_call.1} parent=35 // pred_check_branch
          %317 = sbr.rel (%p315) target = $region40
        $region39: #{tpu_custom_call.1} parent=35 // pred_region
          %318 = dma.done %s311, 512
        $region40: #{tpu_custom_call.1} parent=35 // pred_fallthru
          _
        %s319 = sand.u32 %s31, 1
        %s320 = scalar_lea.sflag [#allocation6], %s319
        %s321 = sand.u32 %s79, 1
        %s322 = smul.addr %s321, 2
        %s323 = scalar_lea.vmem [#allocation5], %s322
        // Predicated region
        $region41: #{tpu_custom_call.1} parent=35 // pred_check
          %p324 = pneg %p92
        $region42: #{tpu_custom_call.1} parent=35 // pred_check_branch
          %326 = sbr.rel (%p324) target = $region44
        $region43: #{tpu_custom_call.1} parent=35 // pred_region
          %327 = dma.done %s320, 32
        $region44: #{tpu_custom_call.1} parent=35 // pred_fallthru
          _
        // Predicated region
        $region45: #{tpu_custom_call.1} parent=35 // pred_check
          %p328 = pneg %p113
        $region46: #{tpu_custom_call.1} parent=35 // pred_check_branch
          %330 = sbr.rel (%p328) target = $region48
        $region47: #{tpu_custom_call.1} parent=35 // pred_region
          %331 = dma.done [#allocation6], 3072
        $region48: #{tpu_custom_call.1} parent=35 // pred_fallthru
          _
        // Predicated region
        $region49: #{tpu_custom_call.1} parent=35 // pred_check
          %p332 = pneg %p134
        $region50: #{tpu_custom_call.1} parent=35 // pred_check_branch
          %334 = sbr.rel (%p332) target = $region52
        $region51: #{tpu_custom_call.1} parent=35 // pred_region
          %335 = dma.done [#allocation9], 48
        $region52: #{tpu_custom_call.1} parent=35 // pred_fallthru
          _
        %s336 = sand.u32 %s53, 1
        %s337 = scalar_lea.sflag [#allocation3], %s336
        %s338 = sand.u32 %s53, 1
        %s339 = smul.addr %s338, 32
        %s340 = scalar_lea.vmem [#allocation2], %s339
        %p341 = pneg %p66
        %p342 = pneg %p63
        %s343 = sand.u32 %s31, 1
        %s344 = scalar_lea.sflag [#allocation6], %s343
        %s345 = sand.u32 %s79, 1
        %s346 = smul.addr %s345, 2
        %s347 = scalar_lea.vmem [#allocation5], %s346
        %p348 = pneg %p92
        %p349 = pneg %p89
        %p350 = pneg %p113
        %p351 = pneg %p110
        %p352 = pneg %p134
        %p353 = pneg %p131
        %p354 = pneg %p162
        %p355 = pneg %p159
        %s356 = sand.u32 %s149, 1
        %s357 = scalar_lea.sflag [#allocation4], %s356
        %s358 = sand.u32 %s149, 1
        %s359 = smul.addr %s358, 64
        %s360 = scalar_lea.vmem [#allocation10], %s359
        %p361 = pneg %p190
        %p362 = pneg %p187
        %s363 = sand.u32 %s31, 1
        %s364 = scalar_lea.sflag [#allocation12], %s363
        %s365 = sand.u32 %s177, 1
        %s366 = smul.addr %s365, 64
        %s367 = scalar_lea.vmem [#allocation11], %s366
        %p368 = pneg %p218
        %p369 = pneg %p215
        %s370 = sand.u32 %s31, 1
        %s371 = scalar_lea.sflag [#allocation12], %s370
        %s372 = sand.u32 %s205, 1
        %s373 = smul.addr %s372, 64
        %s374 = scalar_lea.vmem [#allocation13], %s373
        %s375 = smul.u32 4, %s36
        %s376 = smul.u32 4, %s36
        %s377 = smul.u32 4, %s36
        %s378 = smul.u32 4, %s36
        %v380 = vld [vmem:[%s314] sm:$0xff]
        %v381 = vld [vmem:[%s314 + $0x8] sm:$0xff]
        %v382 = vld [vmem:[%s314 + $0x10] sm:$0xff]
        %v383 = vld [vmem:[%s314 + $0x18] sm:$0xff]
        %v384 = vld [vmem:[%s323] sm:$0x1]
        %v385 = vld [vmem:[%s323 + $0x1] sm:$0x1]
        %386 = vadd.xlane.f32.xlu0 %v380
        %v387 = vpop.xlane.xlu0 %386
        %388 = vadd.xlane.f32.xlu0 %v381
        %v389 = vpop.xlane.xlu0 %388
        %390 = vadd.xlane.f32.xlu0 %v382
        %v391 = vpop.xlane.xlu0 %390
        %392 = vadd.xlane.f32.xlu0 %v383
        %v393 = vpop.xlane.xlu0 %392
        %v394 = vrcp.pop 128.0
        %v395 = vmul.f32 %v387, %v394
        %v396 = vmul.f32 %v389, %v394
        %v397 = vmul.f32 %v391, %v394
        %v398 = vmul.f32 %v393, %v394
        %v399 = vsub.f32 %v380, %v395
        %v400 = vsub.f32 %v381, %v396
        %v401 = vsub.f32 %v382, %v397
        %v402 = vsub.f32 %v383, %v398
        %v403 = vmul.f32 %v399, %v399
        %v404 = vmul.f32 %v400, %v400
        %v405 = vmul.f32 %v401, %v401
        %v406 = vmul.f32 %v402, %v402
        %407 = vadd.xlane.f32.xlu0 %v403
        %v408 = vpop.xlane.xlu0 %407
        %409 = vadd.xlane.f32.xlu0 %v404
        %v410 = vpop.xlane.xlu0 %409
        %411 = vadd.xlane.f32.xlu0 %v405
        %v412 = vpop.xlane.xlu0 %411
        %413 = vadd.xlane.f32.xlu0 %v406
        %v414 = vpop.xlane.xlu0 %413
        %v415 = vmul.f32 %v408, %v394
        %v416 = vmul.f32 %v410, %v394
        %v417 = vmul.f32 %v412, %v394
        %v418 = vmul.f32 %v414, %v394
        %v419 = vadd.f32 %v415, 1e-06
        %v420 = vadd.f32 %v416, 1e-06
        %v421 = vadd.f32 %v417, 1e-06
        %v422 = vadd.f32 %v418, 1e-06
        %v423 = vrsqrt.pop %v419
        %v424 = vrsqrt.pop %v420
        %v425 = vrsqrt.pop %v421
        %v426 = vrsqrt.pop %v422
        %v427 = vmul.f32 %v399, %v423
        %v428 = vmul.f32 %v400, %v424
        %v429 = vmul.f32 %v401, %v425
        %v430 = vmul.f32 %v402, %v426
        %v431 = vadd.f32 %v385, 1.0
        %v433 = vlaneseq
        %v434 = vshrl.u32 %v433, 7
        %v435 = vsub.s32 0, %v434
        %v436 = vrot.slane %v431, %v435
        %v438 = vmul.f32 %v427, %v436
        %v439 = vmul.f32 %v428, %v436
        %v440 = vmul.f32 %v429, %v436
        %v441 = vmul.f32 %v430, %v436
        %v443 = vlaneseq
        %v444 = vshrl.u32 %v443, 7
        %v445 = vsub.s32 0, %v444
        %v446 = vrot.slane %v384, %v445
        %v448 = vadd.f32 %v438, %v446
        %v449 = vadd.f32 %v439, %v446
        %v450 = vadd.f32 %v440, %v446
        %v451 = vadd.f32 %v441, %v446
        %v452 = vpack.c.bf16 %v449, %v448
        %v453 = vpack.c.bf16 %v451, %v450
        %v454 = vld [vmem:[#allocation7] sm:$0xff]
        %v455 = vld [vmem:[#allocation7 + $0x8] sm:$0xf]
        %v456 = vld [vmem:[#allocation7 + $0xc] sm:$0xff]
        %v457 = vld [vmem:[#allocation7 + $0x14] sm:$0xf]
        %v458 = vld [vmem:[#allocation7 + $0x18] sm:$0xff]
        %v459 = vld [vmem:[#allocation7 + $0x20] sm:$0xf]
        %v460 = vld [vmem:[#allocation7 + $0x24] sm:$0xff]
        %v461 = vld [vmem:[#allocation7 + $0x2c] sm:$0xf]
        %v462 = vld [vmem:[#allocation7 + $0x30] sm:$0xff]
        %v463 = vld [vmem:[#allocation7 + $0x38] sm:$0xf]
        %v464 = vld [vmem:[#allocation7 + $0x3c] sm:$0xff]
        %v465 = vld [vmem:[#allocation7 + $0x44] sm:$0xf]
        %v466 = vld [vmem:[#allocation7 + $0x48] sm:$0xff]
        %v467 = vld [vmem:[#allocation7 + $0x50] sm:$0xf]
        %v468 = vld [vmem:[#allocation7 + $0x54] sm:$0xff]
        %v469 = vld [vmem:[#allocation7 + $0x5c] sm:$0xf]
        %v470 = vld [vmem:[#allocation7 + $0x60] sm:$0xff]
        %v471 = vld [vmem:[#allocation7 + $0x68] sm:$0xf]
        %v472 = vld [vmem:[#allocation7 + $0x6c] sm:$0xff]
        %v473 = vld [vmem:[#allocation7 + $0x74] sm:$0xf]
        %v474 = vld [vmem:[#allocation7 + $0x78] sm:$0xff]
        %v475 = vld [vmem:[#allocation7 + $0x80] sm:$0xf]
        %v476 = vld [vmem:[#allocation7 + $0x84] sm:$0xff]
        %v477 = vld [vmem:[#allocation7 + $0x8c] sm:$0xf]
        %v478 = vld [vmem:[#allocation7 + $0x90] sm:$0xff]
        %v479 = vld [vmem:[#allocation7 + $0x98] sm:$0xf]
        %v480 = vld [vmem:[#allocation7 + $0x9c] sm:$0xff]
        %v481 = vld [vmem:[#allocation7 + $0xa4] sm:$0xf]
        %v482 = vld [vmem:[#allocation7 + $0xa8] sm:$0xff]
        %v483 = vld [vmem:[#allocation7 + $0xb0] sm:$0xf]
        %v484 = vld [vmem:[#allocation7 + $0xb4] sm:$0xff]
        %v485 = vld [vmem:[#allocation7 + $0xbc] sm:$0xf]
        %v486 = vld [vmem:[#allocation8] sm:$0x7]
        %v488 = vlaneseq
        %v489 = vshrl.u32 %v488, 7
        %v490 = vsub.s32 0, %v489
        %v491 = vrot.slane %v486, %v490
        %v492 = vlaneseq
        %v493 = vshrl.u32 %v492, 7
        %v494 = vsub.s32 1, %v493
        %v495 = vrot.slane %v486, %v494
        %v496 = vlaneseq
        %v497 = vshrl.u32 %v496, 7
        %v498 = vsub.s32 2, %v497
        %v499 = vrot.slane %v486, %v498
        %v535 = vunpack.c.l.b16 %v454
        %v536 = vunpack.c.h.b16 %v454
        %v537 = vunpack.c.l.b16 %v455
        %v538 = vunpack.c.l.b16 %v456
        %v539 = vunpack.c.h.b16 %v456
        %v540 = vunpack.c.l.b16 %v457
        %v541 = vunpack.c.l.b16 %v458
        %v542 = vunpack.c.h.b16 %v458
        %v543 = vunpack.c.l.b16 %v459
        %v544 = vunpack.c.l.b16 %v460
        %v545 = vunpack.c.h.b16 %v460
        %v546 = vunpack.c.l.b16 %v461
        %v547 = vunpack.c.l.b16 %v462
        %v548 = vunpack.c.h.b16 %v462
        %v549 = vunpack.c.l.b16 %v463
        %v550 = vunpack.c.l.b16 %v464
        %v551 = vunpack.c.h.b16 %v464
        %v552 = vunpack.c.l.b16 %v465
        %v553 = vunpack.c.l.b16 %v466
        %v554 = vunpack.c.h.b16 %v466
        %v555 = vunpack.c.l.b16 %v467
        %v556 = vunpack.c.l.b16 %v468
        %v557 = vunpack.c.h.b16 %v468
        %v558 = vunpack.c.l.b16 %v469
        %v559 = vunpack.c.l.b16 %v470
        %v560 = vunpack.c.h.b16 %v470
        %v561 = vunpack.c.l.b16 %v471
        %v562 = vunpack.c.l.b16 %v472
        %v563 = vunpack.c.h.b16 %v472
        %v564 = vunpack.c.l.b16 %v473
        %v565 = vunpack.c.l.b16 %v474
        %v566 = vunpack.c.h.b16 %v474
        %v567 = vunpack.c.l.b16 %v475
        %v568 = vunpack.c.l.b16 %v476
        %v569 = vunpack.c.h.b16 %v476
        %v570 = vunpack.c.l.b16 %v477
        %v571 = vunpack.c.l.b16 %v478
        %v572 = vunpack.c.h.b16 %v478
        %v573 = vunpack.c.l.b16 %v479
        %v574 = vunpack.c.l.b16 %v480
        %v575 = vunpack.c.h.b16 %v480
        %v576 = vunpack.c.l.b16 %v481
        %v577 = vunpack.c.l.b16 %v482
        %v578 = vunpack.c.h.b16 %v482
        %v579 = vunpack.c.l.b16 %v483
        %v580 = vunpack.c.l.b16 %v484
        %v581 = vunpack.c.h.b16 %v484
        %v582 = vunpack.c.l.b16 %v485
        %v583 = vpack.c.b16 %v538, %v535
        %v584 = vpack.c.b16 %v539, %v536
        %v585 = vpack.c.b16 %v540, %v537
        %v586 = vpack.c.b16 %v544, %v541
        %v587 = vpack.c.b16 %v545, %v542
        %v588 = vpack.c.b16 %v546, %v543
        %v589 = vpack.c.b16 %v550, %v547
        %v590 = vpack.c.b16 %v551, %v548
        %v591 = vpack.c.b16 %v552, %v549
        %v592 = vpack.c.b16 %v556, %v553
        %v593 = vpack.c.b16 %v557, %v554
        %v594 = vpack.c.b16 %v558, %v555
        %v595 = vpack.c.b16 %v562, %v559
        %v596 = vpack.c.b16 %v563, %v560
        %v597 = vpack.c.b16 %v564, %v561
        %v598 = vpack.c.b16 %v568, %v565
        %v599 = vpack.c.b16 %v569, %v566
        %v600 = vpack.c.b16 %v570, %v567
        %v601 = vpack.c.b16 %v574, %v571
        %v602 = vpack.c.b16 %v575, %v572
        %v603 = vpack.c.b16 %v576, %v573
        %v604 = vpack.c.b16 %v580, %v577
        %v605 = vpack.c.b16 %v581, %v578
        %v606 = vpack.c.b16 %v582, %v579
        %631 = vmatprep.subr.bf16.mxu0 %v584
        %632 = vmatpush1.bf16.msra.mxu0 %v583
        %633 = vmatprep.subr.bf16.mxu0 %v587
        %634 = vmatpush1.bf16.msra.mxu0 %v586
        %635 = vmatprep.subr.bf16.mxu0 %v590
        %636 = vmatpush1.bf16.msra.mxu0 %v589
        %637 = vmatprep.subr.bf16.mxu0 %v593
        %638 = vmatpush1.bf16.msra.mxu0 %v592
        %639 = vmatprep.subr.bf16.mxu0 %v596
        %640 = vmatpush1.bf16.msra.mxu0 %v595
        %641 = vmatprep.subr.bf16.mxu0 %v599
        %642 = vmatpush1.bf16.msra.mxu0 %v598
        %643 = vmatprep.subr.bf16.mxu0 %v602
        %644 = vmatpush1.bf16.msra.mxu0 %v601
        %645 = vmatprep.subr.bf16.mxu0 %v605
        %646 = vmatpush1.bf16.msra.mxu0 %v604
        %647 = vmatprep.subr.bf16.mxu0 0
        %648 = vmatpush1.bf16.msra.mxu0 0
        %649 = vmatprep.subr.bf16.mxu0 0
        %650 = vmatpush1.bf16.msra.mxu0 0
        %651 = vmatprep.subr.bf16.mxu0 0
        %652 = vmatpush1.bf16.msra.mxu0 0
        %653 = vmatprep.subr.bf16.mxu0 0
        %654 = vmatpush1.bf16.msra.mxu0 0
        %655 = vmatprep.subr.bf16.mxu0 0
        %656 = vmatpush1.bf16.msra.mxu0 0
        %657 = vmatprep.subr.bf16.mxu0 0
        %658 = vmatpush1.bf16.msra.mxu0 0
        %659 = vmatprep.subr.bf16.mxu0 0
        %660 = vmatpush1.bf16.msra.mxu0 0
        %661 = vmatprep.subr.bf16.mxu0 0
        %662 = vmatpush1.bf16.msra.mxu0 0
        %663 = vmatprep.mubr.bf16.mxu0 0
        %664 = vmatmul.mubr.bf16.gmra.mrb[0].mxu0 %v452
        %v665 = vpop.f32.mrb[0].mxu0
        %v666 = vadd.f32 %v491, %v665
        %v667 = vpop.f32.mrb[0].mxu0
        %v668 = vadd.f32 %v495, %v667
        %v669 = vpop.f32.mrb[0].mxu0
        %v670 = vadd.f32 %v491, %v669
        %v671 = vpop.f32.mrb[0].mxu0
        %v672 = vadd.f32 %v495, %v671
        %673 = vmatprep.mubr.bf16.mxu0 0
        %674 = vmatmul.mubr.bf16.gmra.mrb[0].mxu0 %v453
        %v675 = vpop.f32.mrb[0].mxu0
        %v676 = vadd.f32 %v491, %v675
        %v677 = vpop.f32.mrb[0].mxu0
        %v678 = vadd.f32 %v495, %v677
        %v679 = vpop.f32.mrb[0].mxu0
        %v680 = vadd.f32 %v491, %v679
        %v681 = vpop.f32.mrb[0].mxu0
        %v682 = vadd.f32 %v495, %v681
        %683 = vdwg.mxu0
        %684 = vmatprep.subr.bf16.mxu0 0
        %685 = vmatpush1.bf16.msra.mxu0 %v585
        %686 = vmatprep.subr.bf16.mxu0 0
        %687 = vmatpush1.bf16.msra.mxu0 %v588
        %688 = vmatprep.subr.bf16.mxu0 0
        %689 = vmatpush1.bf16.msra.mxu0 %v591
        %690 = vmatprep.subr.bf16.mxu0 0
        %691 = vmatpush1.bf16.msra.mxu0 %v594
        %692 = vmatprep.subr.bf16.mxu0 0
        %693 = vmatpush1.bf16.msra.mxu0 %v597
        %694 = vmatprep.subr.bf16.mxu0 0
        %695 = vmatpush1.bf16.msra.mxu0 %v600
        %696 = vmatprep.subr.bf16.mxu0 0
        %697 = vmatpush1.bf16.msra.mxu0 %v603
        %698 = vmatprep.subr.bf16.mxu0 0
        %699 = vmatpush1.bf16.msra.mxu0 %v606
        %700 = vmatprep.subr.bf16.mxu0 0
        %701 = vmatpush1.bf16.msra.mxu0 0
        %702 = vmatprep.subr.bf16.mxu0 0
        %703 = vmatpush1.bf16.msra.mxu0 0
        %704 = vmatprep.subr.bf16.mxu0 0
        %705 = vmatpush1.bf16.msra.mxu0 0
        %706 = vmatprep.subr.bf16.mxu0 0
        %707 = vmatpush1.bf16.msra.mxu0 0
        %708 = vmatprep.subr.bf16.mxu0 0
        %709 = vmatpush1.bf16.msra.mxu0 0
        %710 = vmatprep.subr.bf16.mxu0 0
        %711 = vmatpush1.bf16.msra.mxu0 0
        %712 = vmatprep.subr.bf16.mxu0 0
        %713 = vmatpush1.bf16.msra.mxu0 0
        %714 = vmatprep.subr.bf16.mxu0 0
        %715 = vmatpush1.bf16.msra.mxu0 0
        %716 = vmatprep.mubr.bf16.mxu0 0
        %717 = vmatmul.mubr.bf16.gmra.mrb[0].mxu0 %v452
        %v718 = vpop.f32.mrb[0].mxu0
        %v719 = vadd.f32 %v499, %v718
        %v720 = vpop.f32.mrb[0].mxu0
        %v721 = vpop.f32.mrb[0].mxu0
        %v722 = vadd.f32 %v499, %v721
        %v723 = vpop.f32.mrb[0].mxu0
        %724 = vmatprep.mubr.bf16.mxu0 0
        %725 = vmatmul.mubr.bf16.gmra.mrb[0].mxu0 %v453
        %v726 = vpop.f32.mrb[0].mxu0
        %v727 = vadd.f32 %v499, %v726
        %v728 = vpop.f32.mrb[0].mxu0
        %v729 = vpop.f32.mrb[0].mxu0
        %v730 = vadd.f32 %v499, %v729
        %v731 = vpop.f32.mrb[0].mxu0
        %732 = vdwg.mxu0
        %v733 = vpack.c.bf16 %v670, %v666
        %v734 = vpack.c.bf16 %v672, %v668
        %v735 = vpack.c.bf16 %v722, %v719
        %v736 = vpack.c.bf16 %v680, %v676
        %v737 = vpack.c.bf16 %v682, %v678
        %v738 = vpack.c.bf16 %v730, %v727
        %v741 = vunpack.c.l.b16 %v733
        %v742 = vunpack.c.h.b16 %v733
        %v743 = vunpack.c.l.b16 %v736
        %v744 = vunpack.c.h.b16 %v736
        %v745 = vpack.c.b16 %v741, %v741
        %v746 = vpack.c.b16 %v742, %v742
        %v747 = vpack.c.b16 %v743, %v743
        %v748 = vpack.c.b16 %v744, %v744
        %vm753 = vcmask 257024
        %754 = vst.msk [vmem:[%s360] sm:$0xf] %vm753, %v745
        %755 = vst.msk [vmem:[%s360 + $0x4] sm:$0xf] %vm753, %v746
        %756 = vst.msk [vmem:[%s360 + $0x8] sm:$0xf] %vm753, %v747
        %757 = vst.msk [vmem:[%s360 + $0xc] sm:$0xf] %vm753, %v748
        %v760 = vunpack.c.l.b16 %v734
        %v761 = vunpack.c.h.b16 %v734
        %v762 = vunpack.c.l.b16 %v737
        %v763 = vunpack.c.h.b16 %v737
        %v764 = vpack.c.b16 %v760, %v760
        %v765 = vpack.c.b16 %v761, %v761
        %v766 = vpack.c.b16 %v762, %v762
        %v767 = vpack.c.b16 %v763, %v763
        %772 = vst.msk [vmem:[%s367] sm:$0xf] %vm753, %v764
        %773 = vst.msk [vmem:[%s367 + $0x4] sm:$0xf] %vm753, %v765
        %774 = vst.msk [vmem:[%s367 + $0x8] sm:$0xf] %vm753, %v766
        %775 = vst.msk [vmem:[%s367 + $0xc] sm:$0xf] %vm753, %v767
        %v778 = vunpack.c.l.b16 %v735
        %v779 = vunpack.c.h.b16 %v735
        %v780 = vunpack.c.l.b16 %v738
        %v781 = vunpack.c.h.b16 %v738
        %v782 = vpack.c.b16 %v778, %v778
        %v783 = vpack.c.b16 %v779, %v779
        %v784 = vpack.c.b16 %v780, %v780
        %v785 = vpack.c.b16 %v781, %v781
        %790 = vst.msk [vmem:[%s374] sm:$0xf] %vm753, %v782
        %791 = vst.msk [vmem:[%s374 + $0x4] sm:$0xf] %vm753, %v783
        %792 = vst.msk [vmem:[%s374 + $0x8] sm:$0xf] %vm753, %v784
        %793 = vst.msk [vmem:[%s374 + $0xc] sm:$0xf] %vm753, %v785
        %794 = vrot.lane.b32.xlu0 %v745, 96
        %v795 = vpop.permute.xlu0 %794
        %796 = vrot.lane.b32.xlu0 %v746, 96
        %v797 = vpop.permute.xlu0 %796
        %798 = vrot.lane.b32.xlu0 %v747, 96
        %v799 = vpop.permute.xlu0 %798
        %800 = vrot.lane.b32.xlu0 %v748, 96
        %v801 = vpop.permute.xlu0 %800
        %s806 = scalar_lea.vmem %s360, 16 [#allocation10]
        %807 = vst.msk [vmem:[%s806] sm:$0xf] %vm753, %v795
        %808 = vst.msk [vmem:[%s806 + $0x4] sm:$0xf] %vm753, %v797
        %809 = vst.msk [vmem:[%s806 + $0x8] sm:$0xf] %vm753, %v799
        %810 = vst.msk [vmem:[%s806 + $0xc] sm:$0xf] %vm753, %v801
        %811 = vrot.lane.b32.xlu0 %v764, 96
        %v812 = vpop.permute.xlu0 %811
        %813 = vrot.lane.b32.xlu0 %v765, 96
        %v814 = vpop.permute.xlu0 %813
        %815 = vrot.lane.b32.xlu0 %v766, 96
        %v816 = vpop.permute.xlu0 %815
        %817 = vrot.lane.b32.xlu0 %v767, 96
        %v818 = vpop.permute.xlu0 %817
        %s823 = scalar_lea.vmem %s367, 16 [#allocation11]
        %824 = vst.msk [vmem:[%s823] sm:$0xf] %vm753, %v812
        %825 = vst.msk [vmem:[%s823 + $0x4] sm:$0xf] %vm753, %v814
        %826 = vst.msk [vmem:[%s823 + $0x8] sm:$0xf] %vm753, %v816
        %827 = vst.msk [vmem:[%s823 + $0xc] sm:$0xf] %vm753, %v818
        %828 = vrot.lane.b32.xlu0 %v782, 96
        %v829 = vpop.permute.xlu0 %828
        %830 = vrot.lane.b32.xlu0 %v783, 96
        %v831 = vpop.permute.xlu0 %830
        %832 = vrot.lane.b32.xlu0 %v784, 96
        %v833 = vpop.permute.xlu0 %832
        %834 = vrot.lane.b32.xlu0 %v785, 96
        %v835 = vpop.permute.xlu0 %834
        %s840 = scalar_lea.vmem %s374, 16 [#allocation13]
        %841 = vst.msk [vmem:[%s840] sm:$0xf] %vm753, %v829
        %842 = vst.msk [vmem:[%s840 + $0x4] sm:$0xf] %vm753, %v831
        %843 = vst.msk [vmem:[%s840 + $0x8] sm:$0xf] %vm753, %v833
        %844 = vst.msk [vmem:[%s840 + $0xc] sm:$0xf] %vm753, %v835
        %845 = vrot.lane.b32.xlu0 %v745, 64
        %v846 = vpop.permute.xlu0 %845
        %847 = vrot.lane.b32.xlu0 %v746, 64
        %v848 = vpop.permute.xlu0 %847
        %849 = vrot.lane.b32.xlu0 %v747, 64
        %v850 = vpop.permute.xlu0 %849
        %851 = vrot.lane.b32.xlu0 %v748, 64
        %v852 = vpop.permute.xlu0 %851
        %s857 = scalar_lea.vmem %s360, 32 [#allocation10]
        %858 = vst.msk [vmem:[%s857] sm:$0xf] %vm753, %v846
        %859 = vst.msk [vmem:[%s857 + $0x4] sm:$0xf] %vm753, %v848
        %860 = vst.msk [vmem:[%s857 + $0x8] sm:$0xf] %vm753, %v850
        %861 = vst.msk [vmem:[%s857 + $0xc] sm:$0xf] %vm753, %v852
        %862 = vrot.lane.b32.xlu0 %v764, 64
        %v863 = vpop.permute.xlu0 %862
        %864 = vrot.lane.b32.xlu0 %v765, 64
        %v865 = vpop.permute.xlu0 %864
        %866 = vrot.lane.b32.xlu0 %v766, 64
        %v867 = vpop.permute.xlu0 %866
        %868 = vrot.lane.b32.xlu0 %v767, 64
        %v869 = vpop.permute.xlu0 %868
        %s874 = scalar_lea.vmem %s367, 32 [#allocation11]
        %875 = vst.msk [vmem:[%s874] sm:$0xf] %vm753, %v863
        %876 = vst.msk [vmem:[%s874 + $0x4] sm:$0xf] %vm753, %v865
        %877 = vst.msk [vmem:[%s874 + $0x8] sm:$0xf] %vm753, %v867
        %878 = vst.msk [vmem:[%s874 + $0xc] sm:$0xf] %vm753, %v869
        %879 = vrot.lane.b32.xlu0 %v782, 64
        %v880 = vpop.permute.xlu0 %879
        %881 = vrot.lane.b32.xlu0 %v783, 64
        %v882 = vpop.permute.xlu0 %881
        %883 = vrot.lane.b32.xlu0 %v784, 64
        %v884 = vpop.permute.xlu0 %883
        %885 = vrot.lane.b32.xlu0 %v785, 64
        %v886 = vpop.permute.xlu0 %885
        %s891 = scalar_lea.vmem %s374, 32 [#allocation13]
        %892 = vst.msk [vmem:[%s891] sm:$0xf] %vm753, %v880
        %893 = vst.msk [vmem:[%s891 + $0x4] sm:$0xf] %vm753, %v882
        %894 = vst.msk [vmem:[%s891 + $0x8] sm:$0xf] %vm753, %v884
        %895 = vst.msk [vmem:[%s891 + $0xc] sm:$0xf] %vm753, %v886
        %896 = vrot.lane.b32.xlu0 %v745, 32
        %v897 = vpop.permute.xlu0 %896
        %898 = vrot.lane.b32.xlu0 %v746, 32
        %v899 = vpop.permute.xlu0 %898
        %900 = vrot.lane.b32.xlu0 %v747, 32
        %v901 = vpop.permute.xlu0 %900
        %902 = vrot.lane.b32.xlu0 %v748, 32
        %v903 = vpop.permute.xlu0 %902
        %s908 = scalar_lea.vmem %s360, 48 [#allocation10]
        %909 = vst.msk [vmem:[%s908] sm:$0xf] %vm753, %v897
        %910 = vst.msk [vmem:[%s908 + $0x4] sm:$0xf] %vm753, %v899
        %911 = vst.msk [vmem:[%s908 + $0x8] sm:$0xf] %vm753, %v901
        %912 = vst.msk [vmem:[%s908 + $0xc] sm:$0xf] %vm753, %v903
        %913 = vrot.lane.b32.xlu0 %v764, 32
        %v914 = vpop.permute.xlu0 %913
        %915 = vrot.lane.b32.xlu0 %v765, 32
        %v916 = vpop.permute.xlu0 %915
        %917 = vrot.lane.b32.xlu0 %v766, 32
        %v918 = vpop.permute.xlu0 %917
        %919 = vrot.lane.b32.xlu0 %v767, 32
        %v920 = vpop.permute.xlu0 %919
        %s925 = scalar_lea.vmem %s367, 48 [#allocation11]
        %926 = vst.msk [vmem:[%s925] sm:$0xf] %vm753, %v914
        %927 = vst.msk [vmem:[%s925 + $0x4] sm:$0xf] %vm753, %v916
        %928 = vst.msk [vmem:[%s925 + $0x8] sm:$0xf] %vm753, %v918
        %929 = vst.msk [vmem:[%s925 + $0xc] sm:$0xf] %vm753, %v920
        %930 = vrot.lane.b32.xlu0 %v782, 32
        %v931 = vpop.permute.xlu0 %930
        %932 = vrot.lane.b32.xlu0 %v783, 32
        %v933 = vpop.permute.xlu0 %932
        %934 = vrot.lane.b32.xlu0 %v784, 32
        %v935 = vpop.permute.xlu0 %934
        %936 = vrot.lane.b32.xlu0 %v785, 32
        %v937 = vpop.permute.xlu0 %936
        %s942 = scalar_lea.vmem %s374, 48 [#allocation13]
        %943 = vst.msk [vmem:[%s942] sm:$0xf] %vm753, %v931
        %944 = vst.msk [vmem:[%s942 + $0x4] sm:$0xf] %vm753, %v933
        %945 = vst.msk [vmem:[%s942 + $0x8] sm:$0xf] %vm753, %v935
        %946 = vst.msk [vmem:[%s942 + $0xc] sm:$0xf] %vm753, %v937
        %s947 = sand.u32 %s149, 1
        %s948 = scalar_lea.sflag [#allocation4], %s947
        %s949 = sand.u32 %s149, 1
        %s950 = smul.addr %s949, 64
        %s951 = scalar_lea.vmem [#allocation10], %s950
        %s952 = sand.u32 %s31, 1
        %s953 = scalar_lea.sflag [#allocation12], %s952
        %s954 = sand.u32 %s177, 1
        %s955 = smul.addr %s954, 64
        %s956 = scalar_lea.vmem [#allocation11], %s955
        %s957 = sand.u32 %s31, 1
        %s958 = scalar_lea.sflag [#allocation12], %s957
        %s959 = sand.u32 %s205, 1
        %s960 = smul.addr %s959, 64
        %s961 = scalar_lea.vmem [#allocation13], %s960
        // Predicated region
        $region53: #{tpu_custom_call.1} parent=35 // pred_check
          %p962 = pneg %p159
        $region54: #{tpu_custom_call.1} parent=35 // pred_check_branch
          %964 = sbr.rel (%p962) target = $region56
        $region55: #{tpu_custom_call.1} parent=35 // pred_region
          #allocation15 [shape = 'u32[6]{0}', space=smem, size = 0x18, scoped, tag = 'DMA stride descriptor']
          %s965 = smul.u32 4, %s36
          %s967 = ssub.s32 1024, 1024
          %968 = vsyncadd %s948, %s967
          %s969 = smul.addr %s35, 32
          %s970 = sadd.s32 %s965, %s969
          %s971 = smul.addr %s970, 64
          %s972 = scalar_lea.hbm %s4, %s971
          %s974 = sshll.u32 1, 14
          %s975 = sxor.u32 4294967295, %s974
          %s978 = sshll.u32 7, 18
          %s979 = sxor.u32 4294967295, %s978
          %s980 = sand.u32 0, %s979
          %s982 = sor.u32 %s980, 0
          %s984 = sshll.u32 3, 24
          %s985 = sxor.u32 4294967295, %s984
          %s986 = sand.u32 %s982, %s985
          %s988 = sor.u32 %s986, 0
          %s989 = sshll.u32 %s951, 4
          %s990 = int_to_ptr.vmem [resolvable:$true] %s989
          %996 = sst [smem:[#allocation15]] 256
          %s997 = scalar_lea.smem [#allocation15], 1
          %998 = sst [smem:[%s997]] 512
          %s999 = scalar_lea.smem [#allocation15], 2
          %1000 = sst [smem:[%s999]] 4
          %s1001 = scalar_lea.smem [#allocation15], 3
          %1002 = sst [smem:[%s1001]] 64
          %s1003 = scalar_lea.smem [#allocation15], 4
          %1004 = sst [smem:[%s1003]] 64
          %s1005 = scalar_lea.smem [#allocation15], 5
          %1006 = sst [smem:[%s1005]] 4
          %1008 = dma.general %s990, 1024, %s972, %s948, [#allocation14], [#allocation15], %s988, 0
        $region56: #{tpu_custom_call.1} parent=35 // pred_fallthru
          _
        // Predicated region
        $region57: #{tpu_custom_call.1} parent=35 // pred_check
          %p1009 = pneg %p187
        $region58: #{tpu_custom_call.1} parent=35 // pred_check_branch
          %1011 = sbr.rel (%p1009) target = $region60
        $region59: #{tpu_custom_call.1} parent=35 // pred_region
          #allocation17 [shape = 'u32[6]{0}', space=smem, size = 0x18, scoped, tag = 'DMA stride descriptor']
          %s1012 = smul.u32 4, %s36
          %s1014 = ssub.s32 1024, 1024
          %1015 = vsyncadd %s953, %s1014
          %s1016 = smul.addr %s35, 32
          %s1017 = sadd.s32 %s1012, %s1016
          %s1018 = smul.addr %s1017, 64
          %s1019 = scalar_lea.hbm %s5, %s1018
          %s1021 = sshll.u32 1, 14
          %s1022 = sxor.u32 4294967295, %s1021
          %s1025 = sshll.u32 7, 18
          %s1026 = sxor.u32 4294967295, %s1025
          %s1027 = sand.u32 0, %s1026
          %s1029 = sor.u32 %s1027, 0
          %s1031 = sshll.u32 3, 24
          %s1032 = sxor.u32 4294967295, %s1031
          %s1033 = sand.u32 %s1029, %s1032
          %s1035 = sor.u32 %s1033, 0
          %s1036 = sshll.u32 %s956, 4
          %s1037 = int_to_ptr.vmem [resolvable:$true] %s1036
          %1043 = sst [smem:[#allocation17]] 256
          %s1044 = scalar_lea.smem [#allocation17], 1
          %1045 = sst [smem:[%s1044]] 512
          %s1046 = scalar_lea.smem [#allocation17], 2
          %1047 = sst [smem:[%s1046]] 4
          %s1048 = scalar_lea.smem [#allocation17], 3
          %1049 = sst [smem:[%s1048]] 64
          %s1050 = scalar_lea.smem [#allocation17], 4
          %1051 = sst [smem:[%s1050]] 64
          %s1052 = scalar_lea.smem [#allocation17], 5
          %1053 = sst [smem:[%s1052]] 4
          %1055 = dma.general %s1037, 1024, %s1019, %s953, [#allocation16], [#allocation17], %s1035, 0
        $region60: #{tpu_custom_call.1} parent=35 // pred_fallthru
          _
        // Predicated region
        $region61: #{tpu_custom_call.1} parent=35 // pred_check
          %p1056 = pneg %p215
        $region62: #{tpu_custom_call.1} parent=35 // pred_check_branch
          %1058 = sbr.rel (%p1056) target = $region64
        $region63: #{tpu_custom_call.1} parent=35 // pred_region
          #allocation19 [shape = 'u32[6]{0}', space=smem, size = 0x18, scoped, tag = 'DMA stride descriptor']
          %s1059 = smul.u32 4, %s36
          %s1061 = ssub.s32 1024, 1024
          %1062 = vsyncadd %s958, %s1061
          %s1063 = smul.addr %s35, 32
          %s1064 = sadd.s32 %s1059, %s1063
          %s1065 = smul.addr %s1064, 64
          %s1066 = scalar_lea.hbm %s6, %s1065
          %s1068 = sshll.u32 1, 14
          %s1069 = sxor.u32 4294967295, %s1068
          %s1072 = sshll.u32 7, 18
          %s1073 = sxor.u32 4294967295, %s1072
          %s1074 = sand.u32 0, %s1073
          %s1076 = sor.u32 %s1074, 0
          %s1078 = sshll.u32 3, 24
          %s1079 = sxor.u32 4294967295, %s1078
          %s1080 = sand.u32 %s1076, %s1079
          %s1082 = sor.u32 %s1080, 0
          %s1083 = sshll.u32 %s961, 4
          %s1084 = int_to_ptr.vmem [resolvable:$true] %s1083
          %1090 = sst [smem:[#allocation19]] 256
          %s1091 = scalar_lea.smem [#allocation19], 1
          %1092 = sst [smem:[%s1091]] 512
          %s1093 = scalar_lea.smem [#allocation19], 2
          %1094 = sst [smem:[%s1093]] 4
          %s1095 = scalar_lea.smem [#allocation19], 3
          %1096 = sst [smem:[%s1095]] 64
          %s1097 = scalar_lea.smem [#allocation19], 4
          %1098 = sst [smem:[%s1097]] 64
          %s1099 = scalar_lea.smem [#allocation19], 5
          %1100 = sst [smem:[%s1099]] 4
          %1102 = dma.general %s1084, 1024, %s1066, %s958, [#allocation18], [#allocation19], %s1082, 0
        $region64: #{tpu_custom_call.1} parent=35 // pred_fallthru
          _
      $region36: #{tpu_custom_call.1} parent=5 // pred_fallthru
        _
      %p1103 = scmp.le.s32.totalorder 2, %s26
      // Predicated region
      $region65: #{tpu_custom_call.1} parent=5 // pred_check
        %p1104 = pneg %p1103
      $region66: #{tpu_custom_call.1} parent=5 // pred_check_branch
        %1106 = sbr.rel (%p1104) target = $region68
      $region67: #{tpu_custom_call.1} parent=5 // pred_region
        %s1107 = ssub.s32 %s26, 2
        // Predicated region
        $region69: #{tpu_custom_call.1} parent=67 // pred_check
          %p1108 = pneg %p165
        $region70: #{tpu_custom_call.1} parent=67 // pred_check_branch
          %1110 = sbr.rel (%p1108) target = $region72
        $region71: #{tpu_custom_call.1} parent=67 // pred_region
          %s1111 = sand.u32 %s150, 1
          %s1112 = scalar_lea.sflag [#allocation4], %s1111
          %s1113 = sand.u32 %s150, 1
          %s1114 = smul.addr %s1113, 64
          %s1115 = scalar_lea.vmem [#allocation10], %s1114
          %1116 = dma.done %s1112, 1024
        $region72: #{tpu_custom_call.1} parent=67 // pred_fallthru
          _
        // Predicated region
        $region73: #{tpu_custom_call.1} parent=67 // pred_check
          %p1117 = pneg %p193
        $region74: #{tpu_custom_call.1} parent=67 // pred_check_branch
          %1119 = sbr.rel (%p1117) target = $region76
        $region75: #{tpu_custom_call.1} parent=67 // pred_region
          %s1120 = sand.u32 %s32, 1
          %s1121 = scalar_lea.sflag [#allocation12], %s1120
          %s1122 = sand.u32 %s178, 1
          %s1123 = smul.addr %s1122, 64
          %s1124 = scalar_lea.vmem [#allocation11], %s1123
          %1125 = dma.done %s1121, 1024
        $region76: #{tpu_custom_call.1} parent=67 // pred_fallthru
          _
        // Predicated region
        $region77: #{tpu_custom_call.1} parent=67 // pred_check
          %p1126 = pneg %p221
        $region78: #{tpu_custom_call.1} parent=67 // pred_check_branch
          %1128 = sbr.rel (%p1126) target = $region80
        $region79: #{tpu_custom_call.1} parent=67 // pred_region
          %s1129 = sand.u32 %s32, 1
          %s1130 = scalar_lea.sflag [#allocation12], %s1129
          %s1131 = sand.u32 %s206, 1
          %s1132 = smul.addr %s1131, 64
          %s1133 = scalar_lea.vmem [#allocation13], %s1132
          %1134 = dma.done %s1130, 1024
        $region80: #{tpu_custom_call.1} parent=67 // pred_fallthru
          _
      $region68: #{tpu_custom_call.1} parent=5 // pred_fallthru
        _
    $region6: #{tpu_custom_call.1} parent=1 // loop_footer
      %s30 = sadd.s32 1, %s26
    $region7: #{tpu_custom_call.1} parent=1 // loop_footer_branch
      %25 = sbr.rel target = $region3
    $region8: #{tpu_custom_call.1} parent=1 // loop_exit
      _
    %1135 = vsyncpa [#allocation3], 1
    %s1136 = scalar_lea.sflag [#allocation3], 1
    %1137 = vsyncpa %s1136, 1
    %1138 = vsyncpa [#allocation6], 1
    %s1139 = scalar_lea.sflag [#allocation6], 1
    %1140 = vsyncpa %s1139, 1
    %1141 = vsyncpa [#allocation9], 1
    %1142 = vsyncpa [#allocation4], 1
    %s1143 = scalar_lea.sflag [#allocation4], 1
    %1144 = vsyncpa %s1143, 1
    %1145 = vsyncpa [#allocation12], 1
    %s1146 = scalar_lea.sflag [#allocation12], 1
    %1147 = vsyncpa %s1146, 1

// kernel: tpu_custom_call.1
$region0: #{tpu_custom_call.1}
  #allocation0 [shape = 'u32[]', space=smem, size = 0x4, offset = 0x4, fixed_abs, tag = 'smem constant byte address 0x4 - core index']
  #allocation1 [shape = 'u32[144,128]{1,0:T(1,128)}', space=vmem, size = 0x12000, scoped, tag = 'internal scratch']
  #allocation14 [shape = 's32[]', space=sflag, size = 0x4, offset = 0, fixed_abs, tag = 'sflag constant byte address 0x0 - dummy sync flag']
  #allocation16 [shape = 's32[]', space=sflag, size = 0x4, offset = 0, fixed_abs, tag = 'sflag constant byte address 0x0 - dummy sync flag']
  #allocation18 [shape = 's32[]', space=sflag, size = 0x4, offset = 0, fixed_abs, tag = 'sflag constant byte address 0x0 - dummy sync flag']
  %s0 = inlined_call_operand.hbm [shape: f32[2,64,128], index: 0, kind: input, shape index: {}]
  %s1 = inlined_call_operand.hbm [shape: f32[2,1,256], index: 1, kind: input, shape index: {}]
  %s2 = inlined_call_operand.hbm [shape: bf16[128,384], index: 2, kind: input, shape index: {}]
  %s3 = inlined_call_operand.hbm [shape: f32[1,384], index: 3, kind: input, shape index: {}]
  %s4 = inlined_call_operand.hbm [shape: bf16[2,4,64,32], index: 4, kind: output, shape index: {0}]
  %s5 = inlined_call_operand.hbm [shape: bf16[2,4,64,32], index: 5, kind: output, shape index: {1}]
  %s6 = inlined_call_operand.hbm [shape: bf16[2,4,64,32], index: 6, kind: output, shape index: {2}]
  %7 = xla_tuple %s4, %s5, %s6
  %s8 = sld [smem:[#allocation0]]
  $region81: #{tpu_custom_call.1} parent=0
    _
  %s10 = ssub.s32 1, %s8
  %s11 = scalar_select 0, %s10, %s8
  $region1: #{tpu_custom_call.1} parent=0
    #allocation2 [shape = 'u8[32768]{0}', space=vmem, size = 0x8000, scoped, tag = 'input window, operand 0']
    #allocation3 [shape = 's32[2]{0}', space=sflag, size = 0x8, scoped, tag = 'scoped memory for tpu_custom_call.1']
    #allocation4 [shape = 's32[2]{0}', space=sflag, size = 0x8, scoped, tag = 'scoped memory for tpu_custom_call.1']
    #allocation5 [shape = 'u8[2048]{0}', space=vmem, size = 0x800, scoped, tag = 'input window, operand 1']
    #allocation6 [shape = 's32[2]{0}', space=sflag, size = 0x8, scoped, tag = 'scoped memory for tpu_custom_call.1']
    #allocation7 [shape = 'u8[98304]{0}', space=vmem, size = 0x18000, scoped, tag = 'input window, operand 2, single buffered']
    #allocation8 [shape = 'u8[1536]{0}', space=vmem, size = 0x800, scoped, tag = 'input window, operand 3, single buffered']
    #allocation9 [shape = 's32[1]{0}', space=sflag, size = 0x4, scoped, tag = 'scoped memory for tpu_custom_call.1']
    #allocation10 [shape = 'u8[65536]{0}', space=vmem, size = 0x10000, scoped, tag = 'output window, operand 0']
    #allocation11 [shape = 'u8[65536]{0}', space=vmem, size = 0x10000, scoped, tag = 'output window, operand 1']
    #allocation12 [shape = 's32[2]{0}', space=sflag, size = 0x8, scoped, tag = 'scoped memory for tpu_custom_call.1']
    #allocation13 [shape = 'u8[65536]{0}', space=vmem, size = 0x10000, scoped, tag = 'output window, operand 2']
    %12 = vsyncpa [#allocation3], 0
    %s13 = scalar_lea.sflag [#allocation3], 1
    %14 = vsyncpa %s13, 0
    %15 = vsyncpa [#allocation6], 0
    %s16 = scalar_lea.sflag [#allocation6], 1
    %17 = vsyncpa %s16, 0
    %18 = vsyncpa [#allocation9], 0
    %19 = vsyncpa [#allocation4], 0
    %s20 = scalar_lea.sflag [#allocation4], 1
    %21 = vsyncpa %s20, 0
    %22 = vsyncpa [#allocation12], 0
    %s23 = scalar_lea.sflag [#allocation12], 1
    %24 = vsyncpa %s23, 0
    loop: start=0, step=1, limit=6
    $region2: #{tpu_custom_call.1} parent=1 // loop_pre_header
      _
    $region3: #{tpu_custom_call.1} parent=1 // loop_header
      %s26 = sphi 0, %s30
      %p27 = scmp.ge.s32.totalorder %s26, 6
      %s33 = sphi 0, %s45
      %s34 = sphi 0, %s41
      %s35 = sphi 0, %s33
      %s36 = sphi 0, %s34
      %s37 = sphi 0, %s35
      %s38 = sphi 0, %s36
      %s50 = sphi 0, %s52
      %s53 = sphi 0, %s50
      %s54 = sphi 0, %s53
      %s70 = sphi 0, %s54
      %s76 = sphi 0, %s78
      %s79 = sphi 0, %s76
      %s80 = sphi 0, %s79
      %s96 = sphi 0, %s80
      %s100 = sphi 0, %s100
      %s102 = sphi 0, %s100
      %s103 = sphi 0, %s102
      %s117 = sphi 0, %s103
      %s121 = sphi 0, %s121
      %s123 = sphi 0, %s121
      %s124 = sphi 0, %s123
      %s138 = sphi 0, %s124
      %s146 = sphi 0, %s148
      %s149 = sphi 0, %s146
      %s150 = sphi 0, %s149
      %s166 = sphi 0, %s150
      %s174 = sphi 0, %s176
      %s177 = sphi 0, %s174
      %s178 = sphi 0, %s177
      %s194 = sphi 0, %s178
      %s202 = sphi 0, %s204
      %s205 = sphi 0, %s202
      %s206 = sphi 0, %s205
      %s222 = sphi 0, %s206
    $region4: #{tpu_custom_call.1} parent=1 // loop_header_branch
      %29 = sbr.rel (%p27) target = $region8
    $region5: #{tpu_custom_call.1} parent=1 // loop_body
      %s31 = ssub.s32 %s26, 1
      %s32 = ssub.s32 %s26, 2
      %s39 = sadd.s32 1, %s34
      %p40 = scmp.ge.s32.totalorder %s39, 2
      %s41 = scalar_select %p40, 0, %s39
      %s42 = sadd.s32 1, %s33
      %s43 = scalar_select %p40, %s42, %s33
      %p44 = scmp.ge.s32.totalorder %s43, 2
      %s45 = scalar_select %p44, 0, %s43
      %s46 = ssub.s32 %s33, %s45
      %s47 = ssub.s32 %s34, %s41
      %s48 = sor.u32 %s46, %s47
      %p49 = scmp.eq.s32.totalorder %s48, 0
      %s51 = sadd.s32 %s50, 1
      %s52 = scalar_select %p49, %s50, %s51
      %p55 = pneg %p49
      %p56 = scmp.eq.s32.totalorder %s26, 3
      %p57 = por %p55, %p56
      %p58 = scmp.ne.s32.totalorder %s50, %s53
      %p59 = scmp.eq.s32.totalorder %s26, 0
      %p60 = por %p58, %p59
      %p61 = scmp.ne.s32.totalorder %s50, %s53
      %p62 = scmp.eq.s32.totalorder %s31, 3
      %p63 = por %p61, %p62
      %p64 = scmp.ne.s32.totalorder %s53, %s54
      %p65 = scmp.eq.s32.totalorder %s31, 0
      %p66 = por %p64, %p65
      %p67 = scmp.ne.s32.totalorder %s53, %s54
      %p68 = scmp.eq.s32.totalorder %s32, 3
      %p69 = por %p67, %p68
      %p71 = scmp.ne.s32.totalorder %s54, %s70
      %p72 = scmp.eq.s32.totalorder %s32, 0
      %p73 = por %p71, %p72
      %s74 = ssub.s32 %s33, %s45
      %p75 = scmp.eq.s32.totalorder %s74, 0
      %s77 = sadd.s32 %s76, 1
      %s78 = scalar_select %p75, %s76, %s77
      %p81 = pneg %p75
      %p82 = scmp.eq.s32.totalorder %s26, 3
      %p83 = por %p81, %p82
      %p84 = scmp.ne.s32.totalorder %s76, %s79
      %p85 = scmp.eq.s32.totalorder %s26, 0
      %p86 = por %p84, %p85
      %p87 = scmp.ne.s32.totalorder %s76, %s79
      %p88 = scmp.eq.s32.totalorder %s31, 3
      %p89 = por %p87, %p88
      %p90 = scmp.ne.s32.totalorder %s79, %s80
      %p91 = scmp.eq.s32.totalorder %s31, 0
      %p92 = por %p90, %p91
      %p93 = scmp.ne.s32.totalorder %s79, %s80
      %p94 = scmp.eq.s32.totalorder %s32, 3
      %p95 = por %p93, %p94
      %p97 = scmp.ne.s32.totalorder %s80, %s96
      %p98 = scmp.eq.s32.totalorder %s32, 0
      %p99 = por %p97, %p98
      %s101 = sadd.s32 %s100, 1
      %p104 = scmp.eq.s32.totalorder %s26, 3
      %p105 = scmp.ne.s32.totalorder %s100, %s102
      %p106 = scmp.eq.s32.totalorder %s26, 0
      %p107 = por %p105, %p106
      %p108 = scmp.ne.s32.totalorder %s100, %s102
      %p109 = scmp.eq.s32.totalorder %s31, 3
      %p110 = por %p108, %p109
      %p111 = scmp.ne.s32.totalorder %s102, %s103
      %p112 = scmp.eq.s32.totalorder %s31, 0
      %p113 = por %p111, %p112
      %p114 = scmp.ne.s32.totalorder %s102, %s103
      %p115 = scmp.eq.s32.totalorder %s32, 3
      %p116 = por %p114, %p115
      %p118 = scmp.ne.s32.totalorder %s103, %s117
      %p119 = scmp.eq.s32.totalorder %s32, 0
      %p120 = por %p118, %p119
      %s122 = sadd.s32 %s121, 1
      %p125 = scmp.eq.s32.totalorder %s26, 3
      %p126 = scmp.ne.s32.totalorder %s121, %s123
      %p127 = scmp.eq.s32.totalorder %s26, 0
      %p128 = por %p126, %p127
      %p129 = scmp.ne.s32.totalorder %s121, %s123
      %p130 = scmp.eq.s32.totalorder %s31, 3
      %p131 = por %p129, %p130
      %p132 = scmp.ne.s32.totalorder %s123, %s124
      %p133 = scmp.eq.s32.totalorder %s31, 0
      %p134 = por %p132, %p133
      %p135 = scmp.ne.s32.totalorder %s123, %s124
      %p136 = scmp.eq.s32.totalorder %s32, 3
      %p137 = por %p135, %p136
      %p139 = scmp.ne.s32.totalorder %s124, %s138
      %p140 = scmp.eq.s32.totalorder %s32, 0
      %p141 = por %p139, %p140
      %s142 = ssub.s32 %s33, %s45
      %s143 = ssub.s32 %s34, %s41
      %s144 = sor.u32 %s142, %s143
      %p145 = scmp.eq.s32.totalorder %s144, 0
      %s147 = sadd.s32 %s146, 1
      %s148 = scalar_select %p145, %s146, %s147
      %p151 = pneg %p145
      %p152 = scmp.eq.s32.totalorder %s26, 3
      %p153 = por %p151, %p152
      %p154 = scmp.ne.s32.totalorder %s146, %s149
      %p155 = scmp.eq.s32.totalorder %s26, 0
      %p156 = por %p154, %p155
      %p157 = scmp.ne.s32.totalorder %s146, %s149
      %p158 = scmp.eq.s32.totalorder %s31, 3
      %p159 = por %p157, %p158
      %p160 = scmp.ne.s32.totalorder %s149, %s150
      %p161 = scmp.eq.s32.totalorder %s31, 0
      %p162 = por %p160, %p161
      %p163 = scmp.ne.s32.totalorder %s149, %s150
      %p164 = scmp.eq.s32.totalorder %s32, 3
      %p165 = por %p163, %p164
      %p167 = scmp.ne.s32.totalorder %s150, %s166
      %p168 = scmp.eq.s32.totalorder %s32, 0
      %p169 = por %p167, %p168
      %s170 = ssub.s32 %s33, %s45
      %s171 = ssub.s32 %s34, %s41
      %s172 = sor.u32 %s170, %s171
      %p173 = scmp.eq.s32.totalorder %s172, 0
      %s175 = sadd.s32 %s174, 1
      %s176 = scalar_select %p173, %s174, %s175
      %p179 = pneg %p173
      %p180 = scmp.eq.s32.totalorder %s26, 3
      %p181 = por %p179, %p180
      %p182 = scmp.ne.s32.totalorder %s174, %s177
      %p183 = scmp.eq.s32.totalorder %s26, 0
      %p184 = por %p182, %p183
      %p185 = scmp.ne.s32.totalorder %s174, %s177
      %p186 = scmp.eq.s32.totalorder %s31, 3
      %p187 = por %p185, %p186
      %p188 = scmp.ne.s32.totalorder %s177, %s178
      %p189 = scmp.eq.s32.totalorder %s31, 0
      %p190 = por %p188, %p189
      %p191 = scmp.ne.s32.totalorder %s177, %s178
      %p192 = scmp.eq.s32.totalorder %s32, 3
      %p193 = por %p191, %p192
      %p195 = scmp.ne.s32.totalorder %s178, %s194
      %p196 = scmp.eq.s32.totalorder %s32, 0
      %p197 = por %p195, %p196
      %s198 = ssub.s32 %s33, %s45
      %s199 = ssub.s32 %s34, %s41
      %s200 = sor.u32 %s198, %s199
      %p201 = scmp.eq.s32.totalorder %s200, 0
      %s203 = sadd.s32 %s202, 1
      %s204 = scalar_select %p201, %s202, %s203
      %p207 = pneg %p201
      %p208 = scmp.eq.s32.totalorder %s26, 3
      %p209 = por %p207, %p208
      %p210 = scmp.ne.s32.totalorder %s202, %s205
      %p211 = scmp.eq.s32.totalorder %s26, 0
      %p212 = por %p210, %p211
      %p213 = scmp.ne.s32.totalorder %s202, %s205
      %p214 = scmp.eq.s32.totalorder %s31, 3
      %p215 = por %p213, %p214
      %p216 = scmp.ne.s32.totalorder %s205, %s206
      %p217 = scmp.eq.s32.totalorder %s31, 0
      %p218 = por %p216, %p217
      %p219 = scmp.ne.s32.totalorder %s205, %s206
      %p220 = scmp.eq.s32.totalorder %s32, 3
      %p221 = por %p219, %p220
      %p223 = scmp.ne.s32.totalorder %s206, %s222
      %p224 = scmp.eq.s32.totalorder %s32, 0
      %p225 = por %p223, %p224
      %p226 = scmp.le.s32.totalorder 1, %s26
      %p227 = scmp.lt.s32.totalorder %s26, 5
      %p228 = pnand %p226, %p227
      %p229 = pneg %p228
      // Predicated region
      $region9: #{tpu_custom_call.1} parent=5 // pred_check
        _
      $region10: #{tpu_custom_call.1} parent=5 // pred_check_branch
        %231 = sbr.rel (%p228) target = $region12
      $region11: #{tpu_custom_call.1} parent=5 // pred_region
        %s232 = ssub.s32 %s26, 1
        // Predicated region
        $region13: #{tpu_custom_call.1} parent=11 // pred_check
          %p233 = pneg %p113
        $region14: #{tpu_custom_call.1} parent=11 // pred_check_branch
          %235 = sbr.rel (%p233) target = $region16
        $region15: #{tpu_custom_call.1} parent=11 // pred_region
          %s237 = ssub.s32 3072, 3072
          %238 = vsyncadd [#allocation6], %s237
          %s239 = sshll.u32 [#allocation7], 4
          %s240 = int_to_ptr.vmem [resolvable:$true] %s239
          %245 = dma.hbm_to_vmem [thread:$0]  %s2, 3072, %s240, [#allocation6], 192, 192, 12
        $region16: #{tpu_custom_call.1} parent=11 // pred_fallthru
          _
        // Predicated region
        $region17: #{tpu_custom_call.1} parent=11 // pred_check
          %p246 = pneg %p134
        $region18: #{tpu_custom_call.1} parent=11 // pred_check_branch
          %248 = sbr.rel (%p246) target = $region20
        $region19: #{tpu_custom_call.1} parent=11 // pred_region
          %s250 = ssub.s32 48, 48
          %251 = vsyncadd [#allocation9], %s250
          %s253 = sshll.u32 [#allocation8], 4
          %s254 = int_to_ptr.vmem [resolvable:$true] %s253
          %256 = dma.hbm_to_vmem [thread:$0]  %s3, 48, %s254, [#allocation9]
        $region20: #{tpu_custom_call.1} parent=11 // pred_fallthru
          _
      $region12: #{tpu_custom_call.1} parent=5 // pred_fallthru
        _
      %p257 = scmp.lt.s32.totalorder %s26, 4
      // Predicated region
      $region21: #{tpu_custom_call.1} parent=5 // pred_check
        %p258 = pneg %p257
      $region22: #{tpu_custom_call.1} parent=5 // pred_check_branch
        %260 = sbr.rel (%p258) target = $region24
      $region23: #{tpu_custom_call.1} parent=5 // pred_region
        // Predicated region
        $region25: #{tpu_custom_call.1} parent=23 // pred_check
          %p261 = pneg %p60
        $region26: #{tpu_custom_call.1} parent=23 // pred_check_branch
          %263 = sbr.rel (%p261) target = $region28
        $region27: #{tpu_custom_call.1} parent=23 // pred_region
          %s264 = sand.u32 %s50, 1
          %s265 = scalar_lea.sflag [#allocation3], %s264
          %s266 = sand.u32 %s50, 1
          %s267 = smul.addr %s266, 32
          %s268 = scalar_lea.vmem [#allocation2], %s267
          %s269 = smul.u32 4, %s34
          %s271 = ssub.s32 512, 512
          %272 = vsyncadd %s265, %s271
          %s273 = smul.addr %s33, 8
          %s274 = sadd.s32 %s269, %s273
          %s275 = smul.addr %s274, 128
          %s276 = scalar_lea.hbm %s0, %s275
          %s277 = sshll.u32 %s268, 4
          %s278 = int_to_ptr.vmem [resolvable:$true] %s277
          %283 = dma.hbm_to_vmem [thread:$0]  %s276, 512, %s278, %s265, 128, 128, 8
        $region28: #{tpu_custom_call.1} parent=23 // pred_fallthru
          _
        // Predicated region
        $region29: #{tpu_custom_call.1} parent=23 // pred_check
          %p284 = pneg %p86
        $region30: #{tpu_custom_call.1} parent=23 // pred_check_branch
          %286 = sbr.rel (%p284) target = $region32
        $region31: #{tpu_custom_call.1} parent=23 // pred_region
          %s287 = sand.u32 %s26, 1
          %s288 = scalar_lea.sflag [#allocation6], %s287
          %s289 = sand.u32 %s76, 1
          %s290 = smul.addr %s289, 2
          %s291 = scalar_lea.vmem [#allocation5], %s290
          %s293 = ssub.s32 32, 32
          %294 = vsyncadd %s288, %s293
          %s295 = smul.addr %s33, 2
          %s296 = smul.addr %s295, 16
          %s297 = scalar_lea.hbm %s1, %s296
          %s299 = sshll.u32 %s291, 4
          %s300 = int_to_ptr.vmem [resolvable:$true] %s299
          %302 = dma.hbm_to_vmem [thread:$0]  %s297, 32, %s300, %s288
        $region32: #{tpu_custom_call.1} parent=23 // pred_fallthru
          _
      $region24: #{tpu_custom_call.1} parent=5 // pred_fallthru
        _
      %p303 = scmp.le.s32.totalorder 1, %s26
      %p304 = scmp.lt.s32.totalorder %s26, 5
      %p305 = pnand %p303, %p304
      %p306 = pneg %p305
      // Predicated region
      $region33: #{tpu_custom_call.1} parent=5 // pred_check
        _
      $region34: #{tpu_custom_call.1} parent=5 // pred_check_branch
        %308 = sbr.rel (%p305) target = $region36
      $region35: #{tpu_custom_call.1} parent=5 // pred_region
        %s309 = ssub.s32 %s26, 1
        %s310 = sand.u32 %s53, 1
        %s311 = scalar_lea.sflag [#allocation3], %s310
        %s312 = sand.u32 %s53, 1
        %s313 = smul.addr %s312, 32
        %s314 = scalar_lea.vmem [#allocation2], %s313
        // Predicated region
        $region37: #{tpu_custom_call.1} parent=35 // pred_check
          %p315 = pneg %p66
        $region38: #{tpu_custom_call.1} parent=35 // pred_check_branch
          %317 = sbr.rel (%p315) target = $region40
        $region39: #{tpu_custom_call.1} parent=35 // pred_region
          %318 = dma.done %s311, 512
        $region40: #{tpu_custom_call.1} parent=35 // pred_fallthru
          _
        %s319 = sand.u32 %s31, 1
        %s320 = scalar_lea.sflag [#allocation6], %s319
        %s321 = sand.u32 %s79, 1
        %s322 = smul.addr %s321, 2
        %s323 = scalar_lea.vmem [#allocation5], %s322
        // Predicated region
        $region41: #{tpu_custom_call.1} parent=35 // pred_check
          %p324 = pneg %p92
        $region42: #{tpu_custom_call.1} parent=35 // pred_check_branch
          %326 = sbr.rel (%p324) target = $region44
        $region43: #{tpu_custom_call.1} parent=35 // pred_region
          %327 = dma.done %s320, 32
        $region44: #{tpu_custom_call.1} parent=35 // pred_fallthru
          _
        // Predicated region
        $region45: #{tpu_custom_call.1} parent=35 // pred_check
          %p328 = pneg %p113
        $region46: #{tpu_custom_call.1} parent=35 // pred_check_branch
          %330 = sbr.rel (%p328) target = $region48
        $region47: #{tpu_custom_call.1} parent=35 // pred_region
          %331 = dma.done [#allocation6], 3072
        $region48: #{tpu_custom_call.1} parent=35 // pred_fallthru
          _
        // Predicated region
        $region49: #{tpu_custom_call.1} parent=35 // pred_check
          %p332 = pneg %p134
        $region50: #{tpu_custom_call.1} parent=35 // pred_check_branch
          %334 = sbr.rel (%p332) target = $region52
        $region51: #{tpu_custom_call.1} parent=35 // pred_region
          %335 = dma.done [#allocation9], 48
        $region52: #{tpu_custom_call.1} parent=35 // pred_fallthru
          _
        %s336 = sand.u32 %s53, 1
        %s337 = scalar_lea.sflag [#allocation3], %s336
        %s338 = sand.u32 %s53, 1
        %s339 = smul.addr %s338, 32
        %s340 = scalar_lea.vmem [#allocation2], %s339
        %p341 = pneg %p66
        %p342 = pneg %p63
        %s343 = sand.u32 %s31, 1
        %s344 = scalar_lea.sflag [#allocation6], %s343
        %s345 = sand.u32 %s79, 1
        %s346 = smul.addr %s345, 2
        %s347 = scalar_lea.vmem [#allocation5], %s346
        %p348 = pneg %p92
        %p349 = pneg %p89
        %p350 = pneg %p113
        %p351 = pneg %p110
        %p352 = pneg %p134
        %p353 = pneg %p131
        %p354 = pneg %p162
        %p355 = pneg %p159
        %s356 = sand.u32 %s149, 1
        %s357 = scalar_lea.sflag [#allocation4], %s356
        %s358 = sand.u32 %s149, 1
        %s359 = smul.addr %s358, 64
        %s360 = scalar_lea.vmem [#allocation10], %s359
        %p361 = pneg %p190
        %p362 = pneg %p187
        %s363 = sand.u32 %s31, 1
        %s364 = scalar_lea.sflag [#allocation12], %s363
        %s365 = sand.u32 %s177, 1
        %s366 = smul.addr %s365, 64
        %s367 = scalar_lea.vmem [#allocation11], %s366
        %p368 = pneg %p218
        %p369 = pneg %p215
        %s370 = sand.u32 %s31, 1
        %s371 = scalar_lea.sflag [#allocation12], %s370
        %s372 = sand.u32 %s205, 1
        %s373 = smul.addr %s372, 64
        %s374 = scalar_lea.vmem [#allocation13], %s373
        %s375 = smul.u32 4, %s36
        %s376 = smul.u32 4, %s36
        %s377 = smul.u32 4, %s36
        %s378 = smul.u32 4, %s36
        %v380 = vld [vmem:[%s314] sm:$0xff]
        %v381 = vld [vmem:[%s314 + $0x8] sm:$0xff]
        %v382 = vld [vmem:[%s314 + $0x10] sm:$0xff]
        %v383 = vld [vmem:[%s314 + $0x18] sm:$0xff]
        %v384 = vld [vmem:[%s323] sm:$0x1]
        %v385 = vld [vmem:[%s323 + $0x1] sm:$0x1]
        %386 = vadd.xlane.f32.xlu0 %v380
        %v387 = vpop.xlane.xlu0 %386
        %388 = vadd.xlane.f32.xlu0 %v381
        %v389 = vpop.xlane.xlu0 %388
        %390 = vadd.xlane.f32.xlu0 %v382
        %v391 = vpop.xlane.xlu0 %390
        %392 = vadd.xlane.f32.xlu0 %v383
        %v393 = vpop.xlane.xlu0 %392
        %v394 = vrcp.pop 128.0
        %v395 = vmul.f32 %v387, %v394
        %v396 = vmul.f32 %v389, %v394
        %v397 = vmul.f32 %v391, %v394
        %v398 = vmul.f32 %v393, %v394
        %v399 = vsub.f32 %v380, %v395
        %v400 = vsub.f32 %v381, %v396
        %v401 = vsub.f32 %v382, %v397
        %v402 = vsub.f32 %v383, %v398
        %v403 = vmul.f32 %v399, %v399
        %v404 = vmul.f32 %v400, %v400
        %v405 = vmul.f32 %v401, %v401
        %v406 = vmul.f32 %v402, %v402
        %407 = vadd.xlane.f32.xlu0 %v403
        %v408 = vpop.xlane.xlu0 %407
        %409 = vadd.xlane.f32.xlu0 %v404
        %v410 = vpop.xlane.xlu0 %409
        %411 = vadd.xlane.f32.xlu0 %v405
        %v412 = vpop.xlane.xlu0 %411
        %413 = vadd.xlane.f32.xlu0 %v406
        %v414 = vpop.xlane.xlu0 %413
        %v415 = vmul.f32 %v408, %v394
        %v416 = vmul.f32 %v410, %v394
        %v417 = vmul.f32 %v412, %v394
        %v418 = vmul.f32 %v414, %v394
        %v419 = vadd.f32 %v415, 1e-06
        %v420 = vadd.f32 %v416, 1e-06
        %v421 = vadd.f32 %v417, 1e-06
        %v422 = vadd.f32 %v418, 1e-06
        %v423 = vrsqrt.pop %v419
        %v424 = vrsqrt.pop %v420
        %v425 = vrsqrt.pop %v421
        %v426 = vrsqrt.pop %v422
        %v427 = vmul.f32 %v399, %v423
        %v428 = vmul.f32 %v400, %v424
        %v429 = vmul.f32 %v401, %v425
        %v430 = vmul.f32 %v402, %v426
        %v431 = vadd.f32 %v385, 1.0
        %v433 = vlaneseq
        %v434 = vshrl.u32 %v433, 7
        %v435 = vsub.s32 0, %v434
        %v436 = vrot.slane %v431, %v435
        %v438 = vmul.f32 %v427, %v436
        %v439 = vmul.f32 %v428, %v436
        %v440 = vmul.f32 %v429, %v436
        %v441 = vmul.f32 %v430, %v436
        %v443 = vlaneseq
        %v444 = vshrl.u32 %v443, 7
        %v445 = vsub.s32 0, %v444
        %v446 = vrot.slane %v384, %v445
        %v448 = vadd.f32 %v438, %v446
        %v449 = vadd.f32 %v439, %v446
        %v450 = vadd.f32 %v440, %v446
        %v451 = vadd.f32 %v441, %v446
        %v452 = vpack.c.bf16 %v449, %v448
        %v453 = vpack.c.bf16 %v451, %v450
        %v454 = vld [vmem:[#allocation7] sm:$0xff]
        %v455 = vld [vmem:[#allocation7 + $0x8] sm:$0xf]
        %v456 = vld [vmem:[#allocation7 + $0xc] sm:$0xff]
        %v457 = vld [vmem:[#allocation7 + $0x14] sm:$0xf]
        %v458 = vld [vmem:[#allocation7 + $0x18] sm:$0xff]
        %v459 = vld [vmem:[#allocation7 + $0x20] sm:$0xf]
        %v460 = vld [vmem:[#allocation7 + $0x24] sm:$0xff]
        %v461 = vld [vmem:[#allocation7 + $0x2c] sm:$0xf]
        %v462 = vld [vmem:[#allocation7 + $0x30] sm:$0xff]
        %v463 = vld [vmem:[#allocation7 + $0x38] sm:$0xf]
        %v464 = vld [vmem:[#allocation7 + $0x3c] sm:$0xff]
        %v465 = vld [vmem:[#allocation7 + $0x44] sm:$0xf]
        %v466 = vld [vmem:[#allocation7 + $0x48] sm:$0xff]
        %v467 = vld [vmem:[#allocation7 + $0x50] sm:$0xf]
        %v468 = vld [vmem:[#allocation7 + $0x54] sm:$0xff]
        %v469 = vld [vmem:[#allocation7 + $0x5c] sm:$0xf]
        %v470 = vld [vmem:[#allocation7 + $0x60] sm:$0xff]
        %v471 = vld [vmem:[#allocation7 + $0x68] sm:$0xf]
        %v472 = vld [vmem:[#allocation7 + $0x6c] sm:$0xff]
        %v473 = vld [vmem:[#allocation7 + $0x74] sm:$0xf]
        %v474 = vld [vmem:[#allocation7 + $0x78] sm:$0xff]
        %v475 = vld [vmem:[#allocation7 + $0x80] sm:$0xf]
        %v476 = vld [vmem:[#allocation7 + $0x84] sm:$0xff]
        %v477 = vld [vmem:[#allocation7 + $0x8c] sm:$0xf]
        %v478 = vld [vmem:[#allocation7 + $0x90] sm:$0xff]
        %v479 = vld [vmem:[#allocation7 + $0x98] sm:$0xf]
        %v480 = vld [vmem:[#allocation7 + $0x9c] sm:$0xff]
        %v481 = vld [vmem:[#allocation7 + $0xa4] sm:$0xf]
        %v482 = vld [vmem:[#allocation7 + $0xa8] sm:$0xff]
        %v483 = vld [vmem:[#allocation7 + $0xb0] sm:$0xf]
        %v484 = vld [vmem:[#allocation7 + $0xb4] sm:$0xff]
        %v485 = vld [vmem:[#allocation7 + $0xbc] sm:$0xf]
        %v486 = vld [vmem:[#allocation8] sm:$0x7]
        %v488 = vlaneseq
        %v489 = vshrl.u32 %v488, 7
        %v490 = vsub.s32 0, %v489
        %v491 = vrot.slane %v486, %v490
        %v492 = vlaneseq
        %v493 = vshrl.u32 %v492, 7
        %v494 = vsub.s32 1, %v493
        %v495 = vrot.slane %v486, %v494
        %v496 = vlaneseq
        %v497 = vshrl.u32 %v496, 7
        %v498 = vsub.s32 2, %v497
        %v499 = vrot.slane %v486, %v498
        %v535 = vunpack.c.l.b16 %v454
        %v536 = vunpack.c.h.b16 %v454
        %v537 = vunpack.c.l.b16 %v455
        %v538 = vunpack.c.l.b16 %v456
        %v539 = vunpack.c.h.b16 %v456
        %v540 = vunpack.c.l.b16 %v457
        %v541 = vunpack.c.l.b16 %v458
        %v542 = vunpack.c.h.b16 %v458
        %v543 = vunpack.c.l.b16 %v459
        %v544 = vunpack.c.l.b16 %v460
        %v545 = vunpack.c.h.b16 %v460
        %v546 = vunpack.c.l.b16 %v461
        %v547 = vunpack.c.l.b16 %v462
        %v548 = vunpack.c.h.b16 %v462
        %v549 = vunpack.c.l.b16 %v463
        %v550 = vunpack.c.l.b16 %v464
        %v551 = vunpack.c.h.b16 %v464
        %v552 = vunpack.c.l.b16 %v465
        %v553 = vunpack.c.l.b16 %v466
        %v554 = vunpack.c.h.b16 %v466
        %v555 = vunpack.c.l.b16 %v467
        %v556 = vunpack.c.l.b16 %v468
        %v557 = vunpack.c.h.b16 %v468
        %v558 = vunpack.c.l.b16 %v469
        %v559 = vunpack.c.l.b16 %v470
        %v560 = vunpack.c.h.b16 %v470
        %v561 = vunpack.c.l.b16 %v471
        %v562 = vunpack.c.l.b16 %v472
        %v563 = vunpack.c.h.b16 %v472
        %v564 = vunpack.c.l.b16 %v473
        %v565 = vunpack.c.l.b16 %v474
        %v566 = vunpack.c.h.b16 %v474
        %v567 = vunpack.c.l.b16 %v475
        %v568 = vunpack.c.l.b16 %v476
        %v569 = vunpack.c.h.b16 %v476
        %v570 = vunpack.c.l.b16 %v477
        %v571 = vunpack.c.l.b16 %v478
        %v572 = vunpack.c.h.b16 %v478
        %v573 = vunpack.c.l.b16 %v479
        %v574 = vunpack.c.l.b16 %v480
        %v575 = vunpack.c.h.b16 %v480
        %v576 = vunpack.c.l.b16 %v481
        %v577 = vunpack.c.l.b16 %v482
        %v578 = vunpack.c.h.b16 %v482
        %v579 = vunpack.c.l.b16 %v483
        %v580 = vunpack.c.l.b16 %v484
        %v581 = vunpack.c.h.b16 %v484
        %v582 = vunpack.c.l.b16 %v485
        %v583 = vpack.c.b16 %v538, %v535
        %v584 = vpack.c.b16 %v539, %v536
        %v585 = vpack.c.b16 %v540, %v537
        %v586 = vpack.c.b16 %v544, %v541
        %v587 = vpack.c.b16 %v545, %v542
        %v588 = vpack.c.b16 %v546, %v543
        %v589 = vpack.c.b16 %v550, %v547
        %v590 = vpack.c.b16 %v551, %v548
        %v591 = vpack.c.b16 %v552, %v549
        %v592 = vpack.c.b16 %v556, %v553
        %v593 = vpack.c.b16 %v557, %v554
        %v594 = vpack.c.b16 %v558, %v555
        %v595 = vpack.c.b16 %v562, %v559
        %v596 = vpack.c.b16 %v563, %v560
        %v597 = vpack.c.b16 %v564, %v561
        %v598 = vpack.c.b16 %v568, %v565
        %v599 = vpack.c.b16 %v569, %v566
        %v600 = vpack.c.b16 %v570, %v567
        %v601 = vpack.c.b16 %v574, %v571
        %v602 = vpack.c.b16 %v575, %v572
        %v603 = vpack.c.b16 %v576, %v573
        %v604 = vpack.c.b16 %v580, %v577
        %v605 = vpack.c.b16 %v581, %v578
        %v606 = vpack.c.b16 %v582, %v579
        %631 = vmatprep.subr.bf16.mxu0 %v584
        %632 = vmatpush1.bf16.msra.mxu0 %v583
        %633 = vmatprep.subr.bf16.mxu0 %v587
        %634 = vmatpush1.bf16.msra.mxu0 %v586
        %635 = vmatprep.subr.bf16.mxu0 %v590
        %636 = vmatpush1.bf16.msra.mxu0 %v589
        %637 = vmatprep.subr.bf16.mxu0 %v593
        %638 = vmatpush1.bf16.msra.mxu0 %v592
        %639 = vmatprep.subr.bf16.mxu0 %v596
        %640 = vmatpush1.bf16.msra.mxu0 %v595
        %641 = vmatprep.subr.bf16.mxu0 %v599
        %642 = vmatpush1.bf16.msra.mxu0 %v598
        %643 = vmatprep.subr.bf16.mxu0 %v602
        %644 = vmatpush1.bf16.msra.mxu0 %v601
        %645 = vmatprep.subr.bf16.mxu0 %v605
        %646 = vmatpush1.bf16.msra.mxu0 %v604
        %647 = vmatprep.subr.bf16.mxu0 0
        %648 = vmatpush1.bf16.msra.mxu0 0
        %649 = vmatprep.subr.bf16.mxu0 0
        %650 = vmatpush1.bf16.msra.mxu0 0
        %651 = vmatprep.subr.bf16.mxu0 0
        %652 = vmatpush1.bf16.msra.mxu0 0
        %653 = vmatprep.subr.bf16.mxu0 0
        %654 = vmatpush1.bf16.msra.mxu0 0
        %655 = vmatprep.subr.bf16.mxu0 0
        %656 = vmatpush1.bf16.msra.mxu0 0
        %657 = vmatprep.subr.bf16.mxu0 0
        %658 = vmatpush1.bf16.msra.mxu0 0
        %659 = vmatprep.subr.bf16.mxu0 0
        %660 = vmatpush1.bf16.msra.mxu0 0
        %661 = vmatprep.subr.bf16.mxu0 0
        %662 = vmatpush1.bf16.msra.mxu0 0
        %663 = vmatprep.mubr.bf16.mxu0 0
        %664 = vmatmul.mubr.bf16.gmra.mrb[0].mxu0 %v452
        %v665 = vpop.f32.mrb[0].mxu0
        %v666 = vadd.f32 %v491, %v665
        %v667 = vpop.f32.mrb[0].mxu0
        %v668 = vadd.f32 %v495, %v667
        %v669 = vpop.f32.mrb[0].mxu0
        %v670 = vadd.f32 %v491, %v669
        %v671 = vpop.f32.mrb[0].mxu0
        %v672 = vadd.f32 %v495, %v671
        %673 = vmatprep.mubr.bf16.mxu0 0
        %674 = vmatmul.mubr.bf16.gmra.mrb[0].mxu0 %v453
        %v675 = vpop.f32.mrb[0].mxu0
        %v676 = vadd.f32 %v491, %v675
        %v677 = vpop.f32.mrb[0].mxu0
        %v678 = vadd.f32 %v495, %v677
        %v679 = vpop.f32.mrb[0].mxu0
        %v680 = vadd.f32 %v491, %v679
        %v681 = vpop.f32.mrb[0].mxu0
        %v682 = vadd.f32 %v495, %v681
        %683 = vdwg.mxu0
        %684 = vmatprep.subr.bf16.mxu0 0
        %685 = vmatpush1.bf16.msra.mxu0 %v585
        %686 = vmatprep.subr.bf16.mxu0 0
        %687 = vmatpush1.bf16.msra.mxu0 %v588
        %688 = vmatprep.subr.bf16.mxu0 0
        %689 = vmatpush1.bf16.msra.mxu0 %v591
        %690 = vmatprep.subr.bf16.mxu0 0
        %691 = vmatpush1.bf16.msra.mxu0 %v594
        %692 = vmatprep.subr.bf16.mxu0 0
        %693 = vmatpush1.bf16.msra.mxu0 %v597
        %694 = vmatprep.subr.bf16.mxu0 0
        %695 = vmatpush1.bf16.msra.mxu0 %v600
        %696 = vmatprep.subr.bf16.mxu0 0
        %697 = vmatpush1.bf16.msra.mxu0 %v603
        %698 = vmatprep.subr.bf16.mxu0 0
        %699 = vmatpush1.bf16.msra.mxu0 %v606
        %700 = vmatprep.subr.bf16.mxu0 0
        %701 = vmatpush1.bf16.msra.mxu0 0
        %702 = vmatprep.subr.bf16.mxu0 0
        %703 = vmatpush1.bf16.msra.mxu0 0
        %704 = vmatprep.subr.bf16.mxu0 0
        %705 = vmatpush1.bf16.msra.mxu0 0
        %706 = vmatprep.subr.bf16.mxu0 0
        %707 = vmatpush1.bf16.msra.mxu0 0
        %708 = vmatprep.subr.bf16.mxu0 0
        %709 = vmatpush1.bf16.msra.mxu0 0
        %710 = vmatprep.subr.bf16.mxu0 0
        %711 = vmatpush1.bf16.msra.mxu0 0
        %712 = vmatprep.subr.bf16.mxu0 0
        %713 = vmatpush1.bf16.msra.mxu0 0
        %714 = vmatprep.subr.bf16.mxu0 0
        %715 = vmatpush1.bf16.msra.mxu0 0
        %716 = vmatprep.mubr.bf16.mxu0 0
        %717 = vmatmul.mubr.bf16.gmra.mrb[0].mxu0 %v452
        %v718 = vpop.f32.mrb[0].mxu0
        %v719 = vadd.f32 %v499, %v718
        %v720 = vpop.f32.mrb[0].mxu0
        %v721 = vpop.f32.mrb[0].mxu0
        %v722 = vadd.f32 %v499, %v721
        %v723 = vpop.f32.mrb[0].mxu0
        %724 = vmatprep.mubr.bf16.mxu0 0
        %725 = vmatmul.mubr.bf16.gmra.mrb[0].mxu0 %v453
        %v726 = vpop.f32.mrb[0].mxu0
        %v727 = vadd.f32 %v499, %v726
        %v728 = vpop.f32.mrb[0].mxu0
        %v729 = vpop.f32.mrb[0].mxu0
        %v730 = vadd.f32 %v499, %v729
        %v731 = vpop.f32.mrb[0].mxu0
        %732 = vdwg.mxu0
        %v733 = vpack.c.bf16 %v670, %v666
        %v734 = vpack.c.bf16 %v672, %v668
        %v735 = vpack.c.bf16 %v722, %v719
        %v736 = vpack.c.bf16 %v680, %v676
        %v737 = vpack.c.bf16 %v682, %v678
        %v738 = vpack.c.bf16 %v730, %v727
        %v741 = vunpack.c.l.b16 %v733
        %v742 = vunpack.c.h.b16 %v733
        %v743 = vunpack.c.l.b16 %v736
        %v744 = vunpack.c.h.b16 %v736
        %v745 = vpack.c.b16 %v741, %v741
        %v746 = vpack.c.b16 %v742, %v742
        %v747 = vpack.c.b16 %v743, %v743
        %v748 = vpack.c.b16 %v744, %v744
        %vm753 = vcmask 257024
        %754 = vst.msk [vmem:[%s360] sm:$0xf] %vm753, %v745
        %755 = vst.msk [vmem:[%s360 + $0x4] sm:$0xf] %vm753, %v746
        %756 = vst.msk [vmem:[%s360 + $0x8] sm:$0xf] %vm753, %v747
        %757 = vst.msk [vmem:[%s360 + $0xc] sm:$0xf] %vm753, %v748
        %v760 = vunpack.c.l.b16 %v734
        %v761 = vunpack.c.h.b16 %v734
        %v762 = vunpack.c.l.b16 %v737
        %v763 = vunpack.c.h.b16 %v737
        %v764 = vpack.c.b16 %v760, %v760
        %v765 = vpack.c.b16 %v761, %v761
        %v766 = vpack.c.b16 %v762, %v762
        %v767 = vpack.c.b16 %v763, %v763
        %772 = vst.msk [vmem:[%s367] sm:$0xf] %vm753, %v764
        %773 = vst.msk [vmem:[%s367 + $0x4] sm:$0xf] %vm753, %v765
        %774 = vst.msk [vmem:[%s367 + $0x8] sm:$0xf] %vm753, %v766
        %775 = vst.msk [vmem:[%s367 + $0xc] sm:$0xf] %vm753, %v767
        %v778 = vunpack.c.l.b16 %v735
        %v779 = vunpack.c.h.b16 %v735
        %v780 = vunpack.c.l.b16 %v738
        %v781 = vunpack.c.h.b16 %v738
        %v782 = vpack.c.b16 %v778, %v778
        %v783 = vpack.c.b16 %v779, %v779
        %v784 = vpack.c.b16 %v780, %v780
        %v785 = vpack.c.b16 %v781, %v781
        %790 = vst.msk [vmem:[%s374] sm:$0xf] %vm753, %v782
        %791 = vst.msk [vmem:[%s374 + $0x4] sm:$0xf] %vm753, %v783
        %792 = vst.msk [vmem:[%s374 + $0x8] sm:$0xf] %vm753, %v784
        %793 = vst.msk [vmem:[%s374 + $0xc] sm:$0xf] %vm753, %v785
        %794 = vrot.lane.b32.xlu0 %v745, 96
        %v795 = vpop.permute.xlu0 %794
        %796 = vrot.lane.b32.xlu0 %v746, 96
        %v797 = vpop.permute.xlu0 %796
        %798 = vrot.lane.b32.xlu0 %v747, 96
        %v799 = vpop.permute.xlu0 %798
        %800 = vrot.lane.b32.xlu0 %v748, 96
        %v801 = vpop.permute.xlu0 %800
        %s806 = scalar_lea.vmem %s360, 16 [#allocation10]
        %807 = vst.msk [vmem:[%s806] sm:$0xf] %vm753, %v795
        %808 = vst.msk [vmem:[%s806 + $0x4] sm:$0xf] %vm753, %v797
        %809 = vst.msk [vmem:[%s806 + $0x8] sm:$0xf] %vm753, %v799
        %810 = vst.msk [vmem:[%s806 + $0xc] sm:$0xf] %vm753, %v801
        %811 = vrot.lane.b32.xlu0 %v764, 96
        %v812 = vpop.permute.xlu0 %811
        %813 = vrot.lane.b32.xlu0 %v765, 96
        %v814 = vpop.permute.xlu0 %813
        %815 = vrot.lane.b32.xlu0 %v766, 96
        %v816 = vpop.permute.xlu0 %815
        %817 = vrot.lane.b32.xlu0 %v767, 96
        %v818 = vpop.permute.xlu0 %817
        %s823 = scalar_lea.vmem %s367, 16 [#allocation11]
        %824 = vst.msk [vmem:[%s823] sm:$0xf] %vm753, %v812
        %825 = vst.msk [vmem:[%s823 + $0x4] sm:$0xf] %vm753, %v814
        %826 = vst.msk [vmem:[%s823 + $0x8] sm:$0xf] %vm753, %v816
        %827 = vst.msk [vmem:[%s823 + $0xc] sm:$0xf] %vm753, %v818
        %828 = vrot.lane.b32.xlu0 %v782, 96
        %v829 = vpop.permute.xlu0 %828
        %830 = vrot.lane.b32.xlu0 %v783, 96
        %v831 = vpop.permute.xlu0 %830
        %832 = vrot.lane.b32.xlu0 %v784, 96
        %v833 = vpop.permute.xlu0 %832
        %834 = vrot.lane.b32.xlu0 %v785, 96
        %v835 = vpop.permute.xlu0 %834
        %s840 = scalar_lea.vmem %s374, 16 [#allocation13]
        %841 = vst.msk [vmem:[%s840] sm:$0xf] %vm753, %v829
        %842 = vst.msk [vmem:[%s840 + $0x4] sm:$0xf] %vm753, %v831
        %843 = vst.msk [vmem:[%s840 + $0x8] sm:$0xf] %vm753, %v833
        %844 = vst.msk [vmem:[%s840 + $0xc] sm:$0xf] %vm753, %v835
        %845 = vrot.lane.b32.xlu0 %v745, 64
        %v846 = vpop.permute.xlu0 %845
        %847 = vrot.lane.b32.xlu0 %v746, 64
        %v848 = vpop.permute.xlu0 %847
        %849 = vrot.lane.b32.xlu0 %v747, 64
        %v850 = vpop.permute.xlu0 %849
        %851 = vrot.lane.b32.xlu0 %v748, 64
        %v852 = vpop.permute.xlu0 %851
        %s857 = scalar_lea.vmem %s360, 32 [#allocation10]
        %858 = vst.msk [vmem:[%s857] sm:$0xf] %vm753, %v846
        %859 = vst.msk [vmem:[%s857 + $0x4] sm:$0xf] %vm753, %v848
        %860 = vst.msk [vmem:[%s857 + $0x8] sm:$0xf] %vm753, %v850
        %861 = vst.msk [vmem:[%s857 + $0xc] sm:$0xf] %vm753, %v852
        %862 = vrot.lane.b32.xlu0 %v764, 64
        %v863 = vpop.permute.xlu0 %862
        %864 = vrot.lane.b32.xlu0 %v765, 64
        %v865 = vpop.permute.xlu0 %864
        %866 = vrot.lane.b32.xlu0 %v766, 64
        %v867 = vpop.permute.xlu0 %866
        %868 = vrot.lane.b32.xlu0 %v767, 64
        %v869 = vpop.permute.xlu0 %868
        %s874 = scalar_lea.vmem %s367, 32 [#allocation11]
        %875 = vst.msk [vmem:[%s874] sm:$0xf] %vm753, %v863
        %876 = vst.msk [vmem:[%s874 + $0x4] sm:$0xf] %vm753, %v865
        %877 = vst.msk [vmem:[%s874 + $0x8] sm:$0xf] %vm753, %v867
        %878 = vst.msk [vmem:[%s874 + $0xc] sm:$0xf] %vm753, %v869
        %879 = vrot.lane.b32.xlu0 %v782, 64
        %v880 = vpop.permute.xlu0 %879
        %881 = vrot.lane.b32.xlu0 %v783, 64
        %v882 = vpop.permute.xlu0 %881
        %883 = vrot.lane.b32.xlu0 %v784, 64
        %v884 = vpop.permute.xlu0 %883
        %885 = vrot.lane.b32.xlu0 %v785, 64
        %v886 = vpop.permute.xlu0 %885
        %s891 = scalar_lea.vmem %s374, 32 [#allocation13]
        %892 = vst.msk [vmem:[%s891] sm:$0xf] %vm753, %v880
        %893 = vst.msk [vmem:[%s891 + $0x4] sm:$0xf] %vm753, %v882
        %894 = vst.msk [vmem:[%s891 + $0x8] sm:$0xf] %vm753, %v884
        %895 = vst.msk [vmem:[%s891 + $0xc] sm:$0xf] %vm753, %v886
        %896 = vrot.lane.b32.xlu0 %v745, 32
        %v897 = vpop.permute.xlu0 %896
        %898 = vrot.lane.b32.xlu0 %v746, 32
        %v899 = vpop.permute.xlu0 %898
        %900 = vrot.lane.b32.xlu0 %v747, 32
        %v901 = vpop.permute.xlu0 %900
        %902 = vrot.lane.b32.xlu0 %v748, 32
        %v903 = vpop.permute.xlu0 %902
        %s908 = scalar_lea.vmem %s360, 48 [#allocation10]
        %909 = vst.msk [vmem:[%s908] sm:$0xf] %vm753, %v897
        %910 = vst.msk [vmem:[%s908 + $0x4] sm:$0xf] %vm753, %v899
        %911 = vst.msk [vmem:[%s908 + $0x8] sm:$0xf] %vm753, %v901
        %912 = vst.msk [vmem:[%s908 + $0xc] sm:$0xf] %vm753, %v903
        %913 = vrot.lane.b32.xlu0 %v764, 32
        %v914 = vpop.permute.xlu0 %913
        %915 = vrot.lane.b32.xlu0 %v765, 32
        %v916 = vpop.permute.xlu0 %915
        %917 = vrot.lane.b32.xlu0 %v766, 32
        %v918 = vpop.permute.xlu0 %917
        %919 = vrot.lane.b32.xlu0 %v767, 32
        %v920 = vpop.permute.xlu0 %919
        %s925 = scalar_lea.vmem %s367, 48 [#allocation11]
        %926 = vst.msk [vmem:[%s925] sm:$0xf] %vm753, %v914
        %927 = vst.msk [vmem:[%s925 + $0x4] sm:$0xf] %vm753, %v916
        %928 = vst.msk [vmem:[%s925 + $0x8] sm:$0xf] %vm753, %v918
        %929 = vst.msk [vmem:[%s925 + $0xc] sm:$0xf] %vm753, %v920
        %930 = vrot.lane.b32.xlu0 %v782, 32
        %v931 = vpop.permute.xlu0 %930
        %932 = vrot.lane.b32.xlu0 %v783, 32
        %v933 = vpop.permute.xlu0 %932
        %934 = vrot.lane.b32.xlu0 %v784, 32
        %v935 = vpop.permute.xlu0 %934
        %936 = vrot.lane.b32.xlu0 %v785, 32
        %v937 = vpop.permute.xlu0 %936
        %s942 = scalar_lea.vmem %s374, 48 [#allocation13]
        %943 = vst.msk [vmem:[%s942] sm:$0xf] %vm753, %v931
        %944 = vst.msk [vmem:[%s942 + $0x4] sm:$0xf] %vm753, %v933
        %945 = vst.msk [vmem:[%s942 + $0x8] sm:$0xf] %vm753, %v935
        %946 = vst.msk [vmem:[%s942 + $0xc] sm:$0xf] %vm753, %v937
        %s947 = sand.u32 %s149, 1
        %s948 = scalar_lea.sflag [#allocation4], %s947
        %s949 = sand.u32 %s149, 1
        %s950 = smul.addr %s949, 64
        %s951 = scalar_lea.vmem [#allocation10], %s950
        %s952 = sand.u32 %s31, 1
        %s953 = scalar_lea.sflag [#allocation12], %s952
        %s954 = sand.u32 %s177, 1
        %s955 = smul.addr %s954, 64
        %s956 = scalar_lea.vmem [#allocation11], %s955
        %s957 = sand.u32 %s31, 1
        %s958 = scalar_lea.sflag [#allocation12], %s957
        %s959 = sand.u32 %s205, 1
        %s960 = smul.addr %s959, 64
        %s961 = scalar_lea.vmem [#allocation13], %s960
        // Predicated region
        $region53: #{tpu_custom_call.1} parent=35 // pred_check
          %p962 = pneg %p159
        $region54: #{tpu_custom_call.1} parent=35 // pred_check_branch
          %964 = sbr.rel (%p962) target = $region56
        $region55: #{tpu_custom_call.1} parent=35 // pred_region
          #allocation15 [shape = 'u32[6]{0}', space=smem, size = 0x18, scoped, tag = 'DMA stride descriptor']
          %s965 = smul.u32 4, %s36
          %s967 = ssub.s32 1024, 1024
          %968 = vsyncadd %s948, %s967
          %s969 = smul.addr %s35, 32
          %s970 = sadd.s32 %s965, %s969
          %s971 = smul.addr %s970, 64
          %s972 = scalar_lea.hbm %s4, %s971
          %s974 = sshll.u32 1, 14
          %s975 = sxor.u32 4294967295, %s974
          %s978 = sshll.u32 7, 18
          %s979 = sxor.u32 4294967295, %s978
          %s980 = sand.u32 0, %s979
          %s982 = sor.u32 %s980, 0
          %s984 = sshll.u32 3, 24
          %s985 = sxor.u32 4294967295, %s984
          %s986 = sand.u32 %s982, %s985
          %s988 = sor.u32 %s986, 0
          %s989 = sshll.u32 %s951, 4
          %s990 = int_to_ptr.vmem [resolvable:$true] %s989
          %996 = sst [smem:[#allocation15]] 256
          %s997 = scalar_lea.smem [#allocation15], 1
          %998 = sst [smem:[%s997]] 512
          %s999 = scalar_lea.smem [#allocation15], 2
          %1000 = sst [smem:[%s999]] 4
          %s1001 = scalar_lea.smem [#allocation15], 3
          %1002 = sst [smem:[%s1001]] 64
          %s1003 = scalar_lea.smem [#allocation15], 4
          %1004 = sst [smem:[%s1003]] 64
          %s1005 = scalar_lea.smem [#allocation15], 5
          %1006 = sst [smem:[%s1005]] 4
          %1008 = dma.general %s990, 1024, %s972, %s948, [#allocation14], [#allocation15], %s988, 0
        $region56: #{tpu_custom_call.1} parent=35 // pred_fallthru
          _
        // Predicated region
        $region57: #{tpu_custom_call.1} parent=35 // pred_check
          %p1009 = pneg %p187
        $region58: #{tpu_custom_call.1} parent=35 // pred_check_branch
          %1011 = sbr.rel (%p1009) target = $region60
        $region59: #{tpu_custom_call.1} parent=35 // pred_region
          #allocation17 [shape = 'u32[6]{0}', space=smem, size = 0x18, scoped, tag = 'DMA stride descriptor']
          %s1012 = smul.u32 4, %s36
          %s1014 = ssub.s32 1024, 1024
          %1015 = vsyncadd %s953, %s1014
          %s1016 = smul.addr %s35, 32
          %s1017 = sadd.s32 %s1012, %s1016
          %s1018 = smul.addr %s1017, 64
          %s1019 = scalar_lea.hbm %s5, %s1018
          %s1021 = sshll.u32 1, 14
          %s1022 = sxor.u32 4294967295, %s1021
          %s1025 = sshll.u32 7, 18
          %s1026 = sxor.u32 4294967295, %s1025
          %s1027 = sand.u32 0, %s1026
          %s1029 = sor.u32 %s1027, 0
          %s1031 = sshll.u32 3, 24
          %s1032 = sxor.u32 4294967295, %s1031
          %s1033 = sand.u32 %s1029, %s1032
          %s1035 = sor.u32 %s1033, 0
          %s1036 = sshll.u32 %s956, 4
          %s1037 = int_to_ptr.vmem [resolvable:$true] %s1036
          %1043 = sst [smem:[#allocation17]] 256
          %s1044 = scalar_lea.smem [#allocation17], 1
          %1045 = sst [smem:[%s1044]] 512
          %s1046 = scalar_lea.smem [#allocation17], 2
          %1047 = sst [smem:[%s1046]] 4
          %s1048 = scalar_lea.smem [#allocation17], 3
          %1049 = sst [smem:[%s1048]] 64
          %s1050 = scalar_lea.smem [#allocation17], 4
          %1051 = sst [smem:[%s1050]] 64
          %s1052 = scalar_lea.smem [#allocation17], 5
          %1053 = sst [smem:[%s1052]] 4
          %1055 = dma.general %s1037, 1024, %s1019, %s953, [#allocation16], [#allocation17], %s1035, 0
        $region60: #{tpu_custom_call.1} parent=35 // pred_fallthru
          _
        // Predicated region
        $region61: #{tpu_custom_call.1} parent=35 // pred_check
          %p1056 = pneg %p215
        $region62: #{tpu_custom_call.1} parent=35 // pred_check_branch
          %1058 = sbr.rel (%p1056) target = $region64
        $region63: #{tpu_custom_call.1} parent=35 // pred_region
          #allocation19 [shape = 'u32[6]{0}', space=smem, size = 0x18, scoped, tag = 'DMA stride descriptor']
          %s1059 = smul.u32 4, %s36
          %s1061 = ssub.s32 1024, 1024
          %1062 = vsyncadd %s958, %s1061
          %s1063 = smul.addr %s35, 32
          %s1064 = sadd.s32 %s1059, %s1063
          %s1065 = smul.addr %s1064, 64
          %s1066 = scalar_lea.hbm %s6, %s1065
          %s1068 = sshll.u32 1, 14
          %s1069 = sxor.u32 4294967295, %s1068
          %s1072 = sshll.u32 7, 18
          %s1073 = sxor.u32 4294967295, %s1072
          %s1074 = sand.u32 0, %s1073
          %s1076 = sor.u32 %s1074, 0
          %s1078 = sshll.u32 3, 24
          %s1079 = sxor.u32 4294967295, %s1078
          %s1080 = sand.u32 %s1076, %s1079
          %s1082 = sor.u32 %s1080, 0
          %s1083 = sshll.u32 %s961, 4
          %s1084 = int_to_ptr.vmem [resolvable:$true] %s1083
          %1090 = sst [smem:[#allocation19]] 256
          %s1091 = scalar_lea.smem [#allocation19], 1
          %1092 = sst [smem:[%s1091]] 512
          %s1093 = scalar_lea.smem [#allocation19], 2
          %1094 = sst [smem:[%s1093]] 4
          %s1095 = scalar_lea.smem [#allocation19], 3
          %1096 = sst [smem:[%s1095]] 64
          %s1097 = scalar_lea.smem [#allocation19], 4
          %1098 = sst [smem:[%s1097]] 64
          %s1099 = scalar_lea.smem [#allocation19], 5
          %1100 = sst [smem:[%s1099]] 4
          %1102 = dma.general %s1084, 1024, %s1066, %s958, [#allocation18], [#allocation19], %s1082, 0
        $region64: #{tpu_custom_call.1} parent=35 // pred_fallthru
          _
      $region36: #{tpu_custom_call.1} parent=5 // pred_fallthru
        _
      %p1103 = scmp.le.s32.totalorder 2, %s26
      // Predicated region
      $region65: #{tpu_custom_call.1} parent=5 // pred_check
        %p1104 = pneg %p1103
      $region66: #{tpu_custom_call.1} parent=5 // pred_check_branch
        %1106 = sbr.rel (%p1104) target = $region68
      $region67: #{tpu_custom_call.1} parent=5 // pred_region
        %s1107 = ssub.s32 %s26, 2
        // Predicated region
        $region69: #{tpu_custom_call.1} parent=67 // pred_check
          %p1108 = pneg %p165
        $region70: #{tpu_custom_call.1} parent=67 // pred_check_branch
          %1110 = sbr.rel (%p1108) target = $region72
        $region71: #{tpu_custom_call.1} parent=67 // pred_region
          %s1111 = sand.u32 %s150, 1
          %s1112 = scalar_lea.sflag [#allocation4], %s1111
          %s1113 = sand.u32 %s150, 1
          %s1114 = smul.addr %s1113, 64
          %s1115 = scalar_lea.vmem [#allocation10], %s1114
          %1116 = dma.done %s1112, 1024
        $region72: #{tpu_custom_call.1} parent=67 // pred_fallthru
          _
        // Predicated region
        $region73: #{tpu_custom_call.1} parent=67 // pred_check
          %p1117 = pneg %p193
        $region74: #{tpu_custom_call.1} parent=67 // pred_check_branch
          %1119 = sbr.rel (%p1117) target = $region76
        $region75: #{tpu_custom_call.1} parent=67 // pred_region
          %s1120 = sand.u32 %s32, 1
          %s1121 = scalar_lea.sflag [#allocation12], %s1120
          %s1122 = sand.u32 %s178, 1
          %s1123 = smul.addr %s1122, 64
          %s1124 = scalar_lea.vmem [#allocation11], %s1123
          %1125 = dma.done %s1121, 1024
        $region76: #{tpu_custom_call.1} parent=67 // pred_fallthru
          _
        // Predicated region
        $region77: #{tpu_custom_call.1} parent=67 // pred_check
          %p1126 = pneg %p221
        $region78: #{tpu_custom_call.1} parent=67 // pred_check_branch
          %1128 = sbr.rel (%p1126) target = $region80
        $region79: #{tpu_custom_call.1} parent=67 // pred_region
          %s1129 = sand.u32 %s32, 1
          %s1130 = scalar_lea.sflag [#allocation12], %s1129
          %s1131 = sand.u32 %s206, 1
          %s1132 = smul.addr %s1131, 64
          %s1133 = scalar_lea.vmem [#allocation13], %s1132
          %1134 = dma.done %s1130, 1024
        $region80: #{tpu_custom_call.1} parent=67 // pred_fallthru
          _
      $region68: #{tpu_custom_call.1} parent=5 // pred_fallthru
        _
    $region6: #{tpu_custom_call.1} parent=1 // loop_footer
      %s30 = sadd.s32 1, %s26
    $region7: #{tpu_custom_call.1} parent=1 // loop_footer_branch
      %25 = sbr.rel target = $region3
    $region8: #{tpu_custom_call.1} parent=1 // loop_exit
      _
    %1135 = vsyncpa [#allocation3], 1
    %s1136 = scalar_lea.sflag [#allocation3], 1
    %1137 = vsyncpa %s1136, 1
    %1138 = vsyncpa [#allocation6], 1
    %s1139 = scalar_lea.sflag [#allocation6], 1
    %1140 = vsyncpa %s1139, 1
    %1141 = vsyncpa [#allocation9], 1
    %1142 = vsyncpa [#allocation4], 1
    %s1143 = scalar_lea.sflag [#allocation4], 1
    %1144 = vsyncpa %s1143, 1
    %1145 = vsyncpa [#allocation12], 1
    %s1146 = scalar_lea.sflag [#allocation12], 1
    %1147 = vsyncpa %s1146, 1

</llo_original>
